<compile_context>
chip_gen: v7x
topology: tpu7x:2x2x1
jax: 0.10.0
libtpu: 0.0.40
codegen_flags: <defaults>
</compile_context>

<pallas_src>
import functools

import numpy as np
import jax
import jax.numpy as jnp
from jax.experimental import pallas as pl
from jax.experimental.pallas import tpu as pltpu

# ---- small, module-consistent hyperparameters ----
VOCAB = 65           # vocab_size
VOCAB_PAD = 128      # lane-padded vocab for lm_head / one-hot gather
N_EMBD = 32          # n_embd
N_HEAD = 4           # n_head
HEAD_SIZE = N_EMBD // N_HEAD
N_LAYER = 2          # n_layer
BLOCK_SIZE = 16      # block_size (max seq len)
LN_EPS = 1e-5
NEG_INF = -1e30      # finite large-negative (robust vs -inf)


def _layernorm(x, g, b):
    mu = jnp.mean(x, axis=-1, keepdims=True)
    var = jnp.mean((x - mu) ** 2, axis=-1, keepdims=True)
    return (x - mu) * jax.lax.rsqrt(var + LN_EPS) * g + b


# ----------------------------------------------------------------------------
# Host-side (numpy) mask constants, packed into one slab:
#   rows [0, BT)           : additive 0/-1e30 causal x batch-block-diag bias,
#                            lane-tiled over heads                    (BT, H*BT)
#   rows [BT, BT+C)        : kmask[i,j] = (i//hs == j//BT)            (C,  H*BT)
#   rows [BT+C, BT+C+H*BT) : vmask[i,j] = (i//BT == j//hs)            (H*BT, C)
# ----------------------------------------------------------------------------
def _build_consts(B, T):
    BT, C, H, hs = B * T, N_EMBD, N_HEAD, HEAD_SIZE
    HBT = H * BT
    lanes = max(HBT, C)

    r = np.arange(BT)
    rb, rt = r // T, r % T
    c = np.arange(HBT)
    cb, ct = (c % BT) // T, (c % BT) % T
    valid = (rb[:, None] == cb[None, :]) & (rt[:, None] >= ct[None, :])
    attn_bias = np.where(valid, 0.0, NEG_INF).astype(np.float32)

    i = np.arange(C)[:, None]
    j = np.arange(HBT)[None, :]
    kmask = ((i // hs) == (j // BT)).astype(np.float32)
    ii = np.arange(HBT)[:, None]
    jj = np.arange(C)[None, :]
    vmask = ((ii // BT) == (jj // hs)).astype(np.float32)

    consts = np.zeros((BT + C + HBT, lanes), np.float32)
    consts[0:BT, 0:HBT] = attn_bias
    consts[BT:BT + C, 0:HBT] = kmask
    consts[BT + C:BT + C + HBT, 0:C] = vmask
    return jnp.asarray(consts)


# ----------------------------------------------------------------------------
# Single fused forward kernel (no grid: one invocation does the whole model).
# ----------------------------------------------------------------------------
def fused_forward_kernel(B, T, compute_loss, *refs):
    if compute_loss:
        (idx_ref, tgt_ref, consts_ref, pos_ref,
         wide_ref, tall_ref, vecs_ref, logits_ref, nll_ref) = refs
    else:
        (idx_ref, consts_ref, pos_ref,
         wide_ref, tall_ref, vecs_ref, logits_ref) = refs
        tgt_ref = nll_ref = None

    C, H, hs = N_EMBD, N_HEAD, HEAD_SIZE
    BT = B * T
    HBT = H * BT
    scale = C ** (-0.5)      # reference Head.forward scales by n_embd**-0.5

    # --- precomputed mask constants (single packed DMA) ---
    attn_bias = consts_ref[0:BT, 0:HBT]              # (BT, HBT) additive bias
    kmask = consts_ref[BT:BT + C, 0:HBT]             # (C, HBT) head selector
    vmask = consts_ref[BT + C:BT + C + HBT, 0:C]     # (HBT, C) head selector

    vecs = vecs_ref[...]                              # (3L+2, 128) LN/bias slab

    # --- token embedding gather (lane-dense one-hot matmul) + pre-tiled pos ---
    vcol = jax.lax.broadcasted_iota(jnp.int32, (BT, VOCAB_PAD), 1)
    onehot = (vcol == idx_ref[...]).astype(jnp.float32)            # (BT, 128)
    x = jnp.dot(onehot, tall_ref[0],
                preferred_element_type=jnp.float32) + pos_ref[...]  # (BT, C)

    for l in range(N_LAYER):
        lnrow = vecs[3 * l:3 * l + 1, :]
        brow = vecs[3 * l + 1:3 * l + 2, :]
        b1 = vecs[3 * l + 2:3 * l + 3, :]
        ln1g, ln1b = lnrow[:, 0:C], lnrow[:, C:2 * C]
        ln2g, ln2b = lnrow[:, 2 * C:3 * C], lnrow[:, 3 * C:4 * C]
        bo, b2 = brow[:, 0:C], brow[:, C:2 * C]

        w_qkvo = wide_ref[l]                 # (C, 4C) = [Wq | Wk | Wv | Wo]
        w1 = wide_ref[N_LAYER + l]           # (C, 4C)   FFN in
        w2 = tall_ref[1 + l]                 # (4C, C)   FFN out

        # -- multi-head attention: x = x + Wo(concat_heads(attn(LN1(x)))) --
        xn = _layernorm(x, ln1g, ln1b)
        qkvo = jnp.dot(xn, w_qkvo, preferred_element_type=jnp.float32)  # 1 push
        q = qkvo[:, 0:C]            # lane-blocked by head (hs per head)
        k = qkvo[:, C:2 * C]
        v = qkvo[:, 2 * C:3 * C]

        # all-head scores as ONE lane-dense matmul: q @ blockdiag(K_h^T)
        k_bd = jnp.concatenate([k.T] * H, axis=1) * kmask               # (C, HBT)
        scores = (jnp.dot(q, k_bd, preferred_element_type=jnp.float32)
                  * scale + attn_bias)                                   # (BT, HBT)
        m = jnp.max(scores, axis=-1, keepdims=True)   # global row max (safe)
        e = jnp.exp(scores - m)

        # P@V and the per-head softmax denominators as two lane-dense matmuls
        v_bd = jnp.concatenate([v] * H, axis=0) * vmask                  # (HBT, C)
        att_un = jnp.dot(e, v_bd, preferred_element_type=jnp.float32)    # (BT, C)
        denom = jnp.dot(e, vmask, preferred_element_type=jnp.float32)    # (BT, C)
        att = att_un * pl.reciprocal(denom, approx=False)  # exact softmax norm

        wo = w_qkvo[:, 3 * C:4 * C]                   # fused output projection
        x = x + jnp.dot(att, wo, preferred_element_type=jnp.float32) + bo

        # -- feed-forward: x = x + FFN(LN2(x)) --
        xn2 = _layernorm(x, ln2g, ln2b)
        h1 = jnp.maximum(
            jnp.dot(xn2, w1, preferred_element_type=jnp.float32) + b1, 0.0)
        x = x + jnp.dot(h1, w2, preferred_element_type=jnp.float32) + b2

    # --- final LayerNorm + lm_head (lane-padded to 128 columns) ---
    frow = vecs[3 * N_LAYER:3 * N_LAYER + 1, :]
    b_lm = vecs[3 * N_LAYER + 1:3 * N_LAYER + 2, :]   # pad cols carry -1e30
    xf = _layernorm(x, frow[:, 0:C], frow[:, C:2 * C])
    logits = jnp.dot(xf, wide_ref[2 * N_LAYER],
                     preferred_element_type=jnp.float32) + b_lm
    logits_ref[...] = logits                          # (BT, 128) lane-dense

    if compute_loss:
        # fused per-row NLL; pad cols are -1e30 so no extra masking needed
        m2 = jnp.max(logits, axis=-1, keepdims=True)
        lse = jnp.log(jnp.sum(jnp.exp(logits - m2), axis=-1, keepdims=True)) + m2
        tcol = jax.lax.broadcasted_iota(jnp.int32, (BT, VOCAB_PAD), 1)
        picked = jnp.sum(jnp.where(tcol == tgt_ref[...], logits, 0.0),
                         axis=-1, keepdims=True)
        nll_ref[...] = lse - picked                   # (BT, 1); wrapper takes mean


# ----------------------------------------------------------------------------
# Wrapper: one pallas_call for the whole model forward (grid-less; the whole
# working set is ~0.25 MB -> well under VMEM on v5e/v6e/v7x).
# ----------------------------------------------------------------------------
def model_forward(params, idx, targets=None):
    B, T = idx.shape
    BT = B * T
    compute_loss = targets is not None

    consts = _build_consts(B, T)                       # trace-time numpy constant
    pos = jnp.tile(params['pos_emb'][:T], (B, 1))      # pre-tiled (BT, C)

    inputs = [idx.reshape(BT, 1).astype(jnp.int32)]
    if compute_loss:
        inputs.append(targets.reshape(BT, 1).astype(jnp.int32))
    inputs += [consts, pos, params['w_wide'], params['w_tall'], params['vecs']]

    if compute_loss:
        out_shape = (jax.ShapeDtypeStruct((BT, VOCAB_PAD), jnp.float32),
                     jax.ShapeDtypeStruct((BT, 1), jnp.float32))
        out_specs = (pl.BlockSpec(memory_space=pltpu.MemorySpace.VMEM),
                     pl.BlockSpec(memory_space=pltpu.MemorySpace.VMEM))
    else:
        out_shape = jax.ShapeDtypeStruct((BT, VOCAB_PAD), jnp.float32)
        out_specs = pl.BlockSpec(memory_space=pltpu.MemorySpace.VMEM)

    kernel = functools.partial(fused_forward_kernel, B, T, compute_loss)
    outs = pl.pallas_call(
        kernel,
        out_shape=out_shape,
        in_specs=[pl.BlockSpec(memory_space=pltpu.MemorySpace.VMEM)] * len(inputs),
        out_specs=out_specs,
    )(*inputs)

    if compute_loss:
        logits_pad, nll = outs
        loss = jnp.sum(nll) * (1.0 / BT)               # mean NLL (reduced outside)
    else:
        logits_pad, loss = outs, None

    logits = logits_pad[:, :VOCAB].reshape(B, T, VOCAB)
    return logits, loss


# ----------------------------------------------------------------------------
# Deterministic synthetic parameter initialization (packed layout).
# ----------------------------------------------------------------------------
def init_params(key):
    C, L = N_EMBD, N_LAYER
    keys = iter(jax.random.split(key, 40))

    def nrm(shape, scale=0.02):
        return jax.random.normal(next(keys), shape, jnp.float32) * scale

    # wide slab (2L+1, C, 128): per-layer [Wq|Wk|Wv|Wo], per-layer FFN W1, lm_head
    qkvo = [jnp.concatenate([nrm((C, C)), nrm((C, C)), nrm((C, C)), nrm((C, C))],
                            axis=1) for _ in range(L)]
    w1s = [nrm((C, 4 * C)) for _ in range(L)]
    w_lm = jnp.zeros((C, VOCAB_PAD), jnp.float32).at[:, :VOCAB].set(nrm((C, VOCAB)))
    w_wide = jnp.stack(qkvo + w1s + [w_lm], axis=0)

    # tall slab (L+1, 128, C): tok_emb, per-layer FFN W2
    tok = jnp.zeros((VOCAB_PAD, C), jnp.float32).at[:VOCAB].set(nrm((VOCAB, C)))
    w2s = [nrm((4 * C, C)) for _ in range(L)]
    w_tall = jnp.stack([tok] + w2s, axis=0)

    # vector slab (3L+2, 128): per-layer [ln1g|ln1b|ln2g|ln2b], [bo|b2|0], b1;
    # then [lnf_g|lnf_b|0] and b_lm (pad columns = -1e30).
    rows = []
    for _ in range(L):
        rows.append(jnp.concatenate([jnp.ones((C,)), jnp.zeros((C,)),
                                     jnp.ones((C,)), jnp.zeros((C,))]))
        rows.append(jnp.concatenate([nrm((C,)), nrm((C,)), jnp.zeros((2 * C,))]))
        rows.append(nrm((4 * C,)))
    rows.append(jnp.concatenate([jnp.ones((C,)), jnp.zeros((C,)),
                                 jnp.zeros((2 * C,))]))
    rows.append(jnp.full((VOCAB_PAD,), NEG_INF, jnp.float32)
                .at[:VOCAB].set(nrm((VOCAB,))))
    vecs = jnp.stack(rows, axis=0).astype(jnp.float32)

    return {'w_wide': w_wide, 'w_tall': w_tall, 'vecs': vecs,
            'pos_emb': nrm((BLOCK_SIZE, C))}


# TODO(synk): generate()'s multinomial sampling loop is host-side autoregressive
# control flow and is not implemented as a kernel; dropout is eval-mode identity.

if __name__ == "__main__":
    key = jax.random.PRNGKey(0)
    k_param, k_idx, k_tgt = jax.random.split(key, 3)
    params = init_params(k_param)

    B, T = 2, BLOCK_SIZE
    idx = jax.random.randint(k_idx, (B, T), 0, VOCAB, dtype=jnp.int32)
    targets = jax.random.randint(k_tgt, (B, T), 0, VOCAB, dtype=jnp.int32)

    # training-style call: fused cross-entropy tail active in the kernel
    logits, loss = jax.jit(model_forward)(params, idx, targets)
    logits = jax.block_until_ready(logits)
    loss = jax.block_until_ready(loss)
    assert logits.shape == (B, T, VOCAB)
    assert bool(jnp.all(jnp.isfinite(logits)))
    assert bool(jnp.isfinite(loss))

    # inference-style call: CE / loss output statically compiled out
    logits_inf, loss_none = jax.jit(lambda p, i: model_forward(p, i))(params, idx)
    logits_inf = jax.block_until_ready(logits_inf)
    assert logits_inf.shape == (B, T, VOCAB)
    assert loss_none is None

    print("KERNEL_OK")
</pallas_src>

<mosaic_0001>
module attributes {stable_mosaic.version = 11 : i64} {
  func.func @fused_forward_kernel(%arg0: memref<32x1xi32, #tpu.memory_space<vmem>>, %arg1: memref<32x1xi32, #tpu.memory_space<vmem>>, %arg2: memref<192x128xf32, #tpu.memory_space<vmem>>, %arg3: memref<32x32xf32, #tpu.memory_space<vmem>>, %arg4: memref<5x32x128xf32, #tpu.memory_space<vmem>>, %arg5: memref<3x128x32xf32, #tpu.memory_space<vmem>>, %arg6: memref<8x128xf32, #tpu.memory_space<vmem>>, %arg7: memref<32x128xf32, #tpu.memory_space<vmem>>, %arg8: memref<32x1xf32, #tpu.memory_space<vmem>>) attributes {dimension_semantics = [], scalar_prefetch = 0 : i64, scratch_operands = 0 : i64, tpu.core_type = #tpu.core_type<tc>} {
    %c0 = arith.constant 0 : index
    %c0_0 = arith.constant 0 : index
    %0 = vector.load %arg2[%c0, %c0_0] : memref<192x128xf32, #tpu.memory_space<vmem>>, vector<32x128xf32>
    %c32 = arith.constant 32 : index
    %c0_1 = arith.constant 0 : index
    %1 = vector.load %arg2[%c32, %c0_1] : memref<192x128xf32, #tpu.memory_space<vmem>>, vector<32x128xf32>
    %c64 = arith.constant 64 : index
    %c0_2 = arith.constant 0 : index
    %2 = vector.load %arg2[%c64, %c0_2] : memref<192x128xf32, #tpu.memory_space<vmem>>, vector<128x32xf32>
    %c0_3 = arith.constant 0 : index
    %c0_4 = arith.constant 0 : index
    %3 = vector.load %arg6[%c0_3, %c0_4] : memref<8x128xf32, #tpu.memory_space<vmem>>, vector<8x128xf32>
    %4 = tpu.iota {dimensions = array<i32: 1>} : vector<32x128xi32>
    %c0_5 = arith.constant 0 : index
    %c0_6 = arith.constant 0 : index
    %5 = vector.load %arg0[%c0_5, %c0_6] : memref<32x1xi32, #tpu.memory_space<vmem>>, vector<32x1xi32>
    %6 = vector.broadcast %5 : vector<32x1xi32> to vector<32x128xi32>
    %7 = arith.cmpi eq, %4, %6 : vector<32x128xi32>
    %8 = arith.extui %7 : vector<32x128xi1> to vector<32x128xi32>
    %9 = arith.sitofp %8 : vector<32x128xi32> to vector<32x128xf32>
    %c0_7 = arith.constant 0 : index
    %c0_8 = arith.constant 0 : index
    %c0_9 = arith.constant 0 : index
    %10 = vector.load %arg5[%c0_7, %c0_8, %c0_9] : memref<3x128x32xf32, #tpu.memory_space<vmem>>, vector<1x128x32xf32>
    %11 = vector.shape_cast %10 : vector<1x128x32xf32> to vector<128x32xf32>
    %cst = arith.constant dense<0.000000e+00> : vector<32x32xf32>
    %12 = tpu.matmul %9, %11, %cst {dimension_numbers = #tpu.dot_dimension_numbers<[1], [0], [0], [1], [0, 0, 1, 1], [], []>} : vector<32x128xf32>, vector<128x32xf32>, vector<32x32xf32> -> vector<32x32xf32>
    %c0_10 = arith.constant 0 : index
    %c0_11 = arith.constant 0 : index
    %13 = vector.load %arg3[%c0_10, %c0_11] : memref<32x32xf32, #tpu.memory_space<vmem>>, vector<32x32xf32>
    %14 = arith.addf %12, %13 : vector<32x32xf32>
    %15 = vector.extract_strided_slice %3 {offsets = [0, 0], sizes = [1, 128], strides = [1, 1]} : vector<8x128xf32> to vector<1x128xf32>
    %16 = vector.extract_strided_slice %3 {offsets = [1, 0], sizes = [1, 128], strides = [1, 1]} : vector<8x128xf32> to vector<1x128xf32>
    %17 = vector.extract_strided_slice %3 {offsets = [2, 0], sizes = [1, 128], strides = [1, 1]} : vector<8x128xf32> to vector<1x128xf32>
    %18 = vector.extract_strided_slice %15 {offsets = [0, 0], sizes = [1, 32], strides = [1, 1]} : vector<1x128xf32> to vector<1x32xf32>
    %19 = vector.extract_strided_slice %15 {offsets = [0, 32], sizes = [1, 32], strides = [1, 1]} : vector<1x128xf32> to vector<1x32xf32>
    %20 = vector.extract_strided_slice %15 {offsets = [0, 64], sizes = [1, 32], strides = [1, 1]} : vector<1x128xf32> to vector<1x32xf32>
    %21 = vector.extract_strided_slice %15 {offsets = [0, 96], sizes = [1, 32], strides = [1, 1]} : vector<1x128xf32> to vector<1x32xf32>
    %22 = vector.extract_strided_slice %16 {offsets = [0, 0], sizes = [1, 32], strides = [1, 1]} : vector<1x128xf32> to vector<1x32xf32>
    %23 = vector.extract_strided_slice %16 {offsets = [0, 32], sizes = [1, 32], strides = [1, 1]} : vector<1x128xf32> to vector<1x32xf32>
    %c0_12 = arith.constant 0 : index
    %c0_13 = arith.constant 0 : index
    %c0_14 = arith.constant 0 : index
    %24 = vector.load %arg4[%c0_12, %c0_13, %c0_14] : memref<5x32x128xf32, #tpu.memory_space<vmem>>, vector<1x32x128xf32>
    %25 = vector.shape_cast %24 : vector<1x32x128xf32> to vector<32x128xf32>
    %c2 = arith.constant 2 : index
    %c0_15 = arith.constant 0 : index
    %c0_16 = arith.constant 0 : index
    %26 = vector.load %arg4[%c2, %c0_15, %c0_16] : memref<5x32x128xf32, #tpu.memory_space<vmem>>, vector<1x32x128xf32>
    %27 = vector.shape_cast %26 : vector<1x32x128xf32> to vector<32x128xf32>
    %c1 = arith.constant 1 : index
    %c0_17 = arith.constant 0 : index
    %c0_18 = arith.constant 0 : index
    %28 = vector.load %arg5[%c1, %c0_17, %c0_18] : memref<3x128x32xf32, #tpu.memory_space<vmem>>, vector<1x128x32xf32>
    %29 = vector.shape_cast %28 : vector<1x128x32xf32> to vector<128x32xf32>
    %cst_19 = arith.constant dense<0.000000e+00> : vector<32xf32>
    %30 = vector.multi_reduction <add>, %14, %cst_19 [1] : vector<32x32xf32> to vector<32xf32>
    %31 = vector.shape_cast %30 : vector<32xf32> to vector<32x1xf32>
    %cst_20 = arith.constant 3.200000e+01 : f32
    %32 = vector.broadcast %cst_20 : f32 to vector<32x1xf32>
    %33 = arith.divf %31, %32 : vector<32x1xf32>
    %34 = vector.broadcast %33 : vector<32x1xf32> to vector<32x32xf32>
    %35 = arith.subf %14, %34 : vector<32x32xf32>
    %36 = arith.mulf %35, %35 : vector<32x32xf32>
    %cst_21 = arith.constant dense<0.000000e+00> : vector<32xf32>
    %37 = vector.multi_reduction <add>, %36, %cst_21 [1] : vector<32x32xf32> to vector<32xf32>
    %38 = vector.shape_cast %37 : vector<32xf32> to vector<32x1xf32>
    %cst_22 = arith.constant 3.200000e+01 : f32
    %39 = vector.broadcast %cst_22 : f32 to vector<32x1xf32>
    %40 = arith.divf %38, %39 : vector<32x1xf32>
    %41 = vector.broadcast %33 : vector<32x1xf32> to vector<32x32xf32>
    %42 = arith.subf %14, %41 : vector<32x32xf32>
    %cst_23 = arith.constant 9.99999974E-6 : f32
    %43 = vector.broadcast %cst_23 : f32 to vector<32x1xf32>
    %44 = arith.addf %40, %43 : vector<32x1xf32>
    %45 = math.rsqrt %44 : vector<32x1xf32>
    %46 = vector.broadcast %45 : vector<32x1xf32> to vector<32x32xf32>
    %47 = arith.mulf %42, %46 : vector<32x32xf32>
    %48 = vector.broadcast %18 : vector<1x32xf32> to vector<32x32xf32>
    %49 = arith.mulf %47, %48 : vector<32x32xf32>
    %50 = vector.broadcast %19 : vector<1x32xf32> to vector<32x32xf32>
    %51 = arith.addf %49, %50 : vector<32x32xf32>
    %cst_24 = arith.constant dense<0.000000e+00> : vector<32x128xf32>
    %52 = tpu.matmul %51, %25, %cst_24 {dimension_numbers = #tpu.dot_dimension_numbers<[1], [0], [0], [1], [0, 0, 1, 1], [], []>} : vector<32x32xf32>, vector<32x128xf32>, vector<32x128xf32> -> vector<32x128xf32>
    %53 = vector.extract_strided_slice %52 {offsets = [0, 0], sizes = [32, 32], strides = [1, 1]} : vector<32x128xf32> to vector<32x32xf32>
    %54 = vector.extract_strided_slice %52 {offsets = [0, 32], sizes = [32, 32], strides = [1, 1]} : vector<32x128xf32> to vector<32x32xf32>
    %55 = vector.extract_strided_slice %52 {offsets = [0, 64], sizes = [32, 32], strides = [1, 1]} : vector<32x128xf32> to vector<32x32xf32>
    %56 = tpu.transpose %54, [1, 0] : vector<32x32xf32> -> vector<32x32xf32>
    %57 = tpu.concatenate %56, %56, %56, %56 in 1 : vector<32x32xf32>, vector<32x32xf32>, vector<32x32xf32>, vector<32x32xf32> -> vector<32x128xf32>
    %58 = arith.mulf %57, %1 : vector<32x128xf32>
    %cst_25 = arith.constant dense<0.000000e+00> : vector<32x128xf32>
    %59 = tpu.matmul %53, %58, %cst_25 {dimension_numbers = #tpu.dot_dimension_numbers<[1], [0], [0], [1], [0, 0, 1, 1], [], []>} : vector<32x32xf32>, vector<32x128xf32>, vector<32x128xf32> -> vector<32x128xf32>
    %cst_26 = arith.constant 0.176776692 : f32
    %60 = vector.broadcast %cst_26 : f32 to vector<32x128xf32>
    %61 = arith.mulf %59, %60 : vector<32x128xf32>
    %62 = arith.addf %61, %0 : vector<32x128xf32>
    %cst_27 = arith.constant dense<0xFF800000> : vector<32xf32>
    %63 = vector.multi_reduction <maximumf>, %62, %cst_27 [1] : vector<32x128xf32> to vector<32xf32>
    %64 = vector.shape_cast %63 : vector<32xf32> to vector<32x1xf32>
    %65 = vector.broadcast %64 : vector<32x1xf32> to vector<32x128xf32>
    %66 = arith.subf %62, %65 : vector<32x128xf32>
    %67 = math.exp %66 : vector<32x128xf32>
    %68 = tpu.concatenate %55, %55, %55, %55 in 0 : vector<32x32xf32>, vector<32x32xf32>, vector<32x32xf32>, vector<32x32xf32> -> vector<128x32xf32>
    %69 = arith.mulf %68, %2 : vector<128x32xf32>
    %cst_28 = arith.constant dense<0.000000e+00> : vector<32x32xf32>
    %70 = tpu.matmul %67, %69, %cst_28 {dimension_numbers = #tpu.dot_dimension_numbers<[1], [0], [0], [1], [0, 0, 1, 1], [], []>} : vector<32x128xf32>, vector<128x32xf32>, vector<32x32xf32> -> vector<32x32xf32>
    %cst_29 = arith.constant dense<0.000000e+00> : vector<32x32xf32>
    %71 = tpu.matmul %67, %2, %cst_29 {dimension_numbers = #tpu.dot_dimension_numbers<[1], [0], [0], [1], [0, 0, 1, 1], [], []>} : vector<32x128xf32>, vector<128x32xf32>, vector<32x32xf32> -> vector<32x32xf32>
    %72 = tpu.reciprocal %71 : vector<32x32xf32> -> vector<32x32xf32>
    %73 = arith.mulf %70, %72 : vector<32x32xf32>
    %74 = vector.extract_strided_slice %25 {offsets = [0, 96], sizes = [32, 32], strides = [1, 1]} : vector<32x128xf32> to vector<32x32xf32>
    %cst_30 = arith.constant dense<0.000000e+00> : vector<32x32xf32>
    %75 = tpu.matmul %73, %74, %cst_30 {dimension_numbers = #tpu.dot_dimension_numbers<[1], [0], [0], [1], [0, 0, 1, 1], [], []>} : vector<32x32xf32>, vector<32x32xf32>, vector<32x32xf32> -> vector<32x32xf32>
    %76 = arith.addf %14, %75 : vector<32x32xf32>
    %77 = vector.broadcast %22 : vector<1x32xf32> to vector<32x32xf32>
    %78 = arith.addf %76, %77 : vector<32x32xf32>
    %cst_31 = arith.constant dense<0.000000e+00> : vector<32xf32>
    %79 = vector.multi_reduction <add>, %78, %cst_31 [1] : vector<32x32xf32> to vector<32xf32>
    %80 = vector.shape_cast %79 : vector<32xf32> to vector<32x1xf32>
    %cst_32 = arith.constant 3.200000e+01 : f32
    %81 = vector.broadcast %cst_32 : f32 to vector<32x1xf32>
    %82 = arith.divf %80, %81 : vector<32x1xf32>
    %83 = vector.broadcast %82 : vector<32x1xf32> to vector<32x32xf32>
    %84 = arith.subf %78, %83 : vector<32x32xf32>
    %85 = arith.mulf %84, %84 : vector<32x32xf32>
    %cst_33 = arith.constant dense<0.000000e+00> : vector<32xf32>
    %86 = vector.multi_reduction <add>, %85, %cst_33 [1] : vector<32x32xf32> to vector<32xf32>
    %87 = vector.shape_cast %86 : vector<32xf32> to vector<32x1xf32>
    %cst_34 = arith.constant 3.200000e+01 : f32
    %88 = vector.broadcast %cst_34 : f32 to vector<32x1xf32>
    %89 = arith.divf %87, %88 : vector<32x1xf32>
    %90 = vector.broadcast %82 : vector<32x1xf32> to vector<32x32xf32>
    %91 = arith.subf %78, %90 : vector<32x32xf32>
    %cst_35 = arith.constant 9.99999974E-6 : f32
    %92 = vector.broadcast %cst_35 : f32 to vector<32x1xf32>
    %93 = arith.addf %89, %92 : vector<32x1xf32>
    %94 = math.rsqrt %93 : vector<32x1xf32>
    %95 = vector.broadcast %94 : vector<32x1xf32> to vector<32x32xf32>
    %96 = arith.mulf %91, %95 : vector<32x32xf32>
    %97 = vector.broadcast %20 : vector<1x32xf32> to vector<32x32xf32>
    %98 = arith.mulf %96, %97 : vector<32x32xf32>
    %99 = vector.broadcast %21 : vector<1x32xf32> to vector<32x32xf32>
    %100 = arith.addf %98, %99 : vector<32x32xf32>
    %cst_36 = arith.constant dense<0.000000e+00> : vector<32x128xf32>
    %101 = tpu.matmul %100, %27, %cst_36 {dimension_numbers = #tpu.dot_dimension_numbers<[1], [0], [0], [1], [0, 0, 1, 1], [], []>} : vector<32x32xf32>, vector<32x128xf32>, vector<32x128xf32> -> vector<32x128xf32>
    %102 = vector.broadcast %17 : vector<1x128xf32> to vector<32x128xf32>
    %103 = arith.addf %101, %102 : vector<32x128xf32>
    %cst_37 = arith.constant 0.000000e+00 : f32
    %104 = vector.broadcast %cst_37 : f32 to vector<32x128xf32>
    %105 = arith.maximumf %103, %104 : vector<32x128xf32>
    %cst_38 = arith.constant dense<0.000000e+00> : vector<32x32xf32>
    %106 = tpu.matmul %105, %29, %cst_38 {dimension_numbers = #tpu.dot_dimension_numbers<[1], [0], [0], [1], [0, 0, 1, 1], [], []>} : vector<32x128xf32>, vector<128x32xf32>, vector<32x32xf32> -> vector<32x32xf32>
    %107 = arith.addf %78, %106 : vector<32x32xf32>
    %108 = vector.broadcast %23 : vector<1x32xf32> to vector<32x32xf32>
    %109 = arith.addf %107, %108 : vector<32x32xf32>
    %110 = vector.extract_strided_slice %3 {offsets = [3, 0], sizes = [1, 128], strides = [1, 1]} : vector<8x128xf32> to vector<1x128xf32>
    %111 = vector.extract_strided_slice %3 {offsets = [4, 0], sizes = [1, 128], strides = [1, 1]} : vector<8x128xf32> to vector<1x128xf32>
    %112 = vector.extract_strided_slice %3 {offsets = [5, 0], sizes = [1, 128], strides = [1, 1]} : vector<8x128xf32> to vector<1x128xf32>
    %113 = vector.extract_strided_slice %110 {offsets = [0, 0], sizes = [1, 32], strides = [1, 1]} : vector<1x128xf32> to vector<1x32xf32>
    %114 = vector.extract_strided_slice %110 {offsets = [0, 32], sizes = [1, 32], strides = [1, 1]} : vector<1x128xf32> to vector<1x32xf32>
    %115 = vector.extract_strided_slice %110 {offsets = [0, 64], sizes = [1, 32], strides = [1, 1]} : vector<1x128xf32> to vector<1x32xf32>
    %116 = vector.extract_strided_slice %110 {offsets = [0, 96], sizes = [1, 32], strides = [1, 1]} : vector<1x128xf32> to vector<1x32xf32>
    %117 = vector.extract_strided_slice %111 {offsets = [0, 0], sizes = [1, 32], strides = [1, 1]} : vector<1x128xf32> to vector<1x32xf32>
    %118 = vector.extract_strided_slice %111 {offsets = [0, 32], sizes = [1, 32], strides = [1, 1]} : vector<1x128xf32> to vector<1x32xf32>
    %c1_39 = arith.constant 1 : index
    %c0_40 = arith.constant 0 : index
    %c0_41 = arith.constant 0 : index
    %119 = vector.load %arg4[%c1_39, %c0_40, %c0_41] : memref<5x32x128xf32, #tpu.memory_space<vmem>>, vector<1x32x128xf32>
    %120 = vector.shape_cast %119 : vector<1x32x128xf32> to vector<32x128xf32>
    %c3 = arith.constant 3 : index
    %c0_42 = arith.constant 0 : index
    %c0_43 = arith.constant 0 : index
    %121 = vector.load %arg4[%c3, %c0_42, %c0_43] : memref<5x32x128xf32, #tpu.memory_space<vmem>>, vector<1x32x128xf32>
    %122 = vector.shape_cast %121 : vector<1x32x128xf32> to vector<32x128xf32>
    %c2_44 = arith.constant 2 : index
    %c0_45 = arith.constant 0 : index
    %c0_46 = arith.constant 0 : index
    %123 = vector.load %arg5[%c2_44, %c0_45, %c0_46] : memref<3x128x32xf32, #tpu.memory_space<vmem>>, vector<1x128x32xf32>
    %124 = vector.shape_cast %123 : vector<1x128x32xf32> to vector<128x32xf32>
    %cst_47 = arith.constant dense<0.000000e+00> : vector<32xf32>
    %125 = vector.multi_reduction <add>, %109, %cst_47 [1] : vector<32x32xf32> to vector<32xf32>
    %126 = vector.shape_cast %125 : vector<32xf32> to vector<32x1xf32>
    %cst_48 = arith.constant 3.200000e+01 : f32
    %127 = vector.broadcast %cst_48 : f32 to vector<32x1xf32>
    %128 = arith.divf %126, %127 : vector<32x1xf32>
    %129 = vector.broadcast %128 : vector<32x1xf32> to vector<32x32xf32>
    %130 = arith.subf %109, %129 : vector<32x32xf32>
    %131 = arith.mulf %130, %130 : vector<32x32xf32>
    %cst_49 = arith.constant dense<0.000000e+00> : vector<32xf32>
    %132 = vector.multi_reduction <add>, %131, %cst_49 [1] : vector<32x32xf32> to vector<32xf32>
    %133 = vector.shape_cast %132 : vector<32xf32> to vector<32x1xf32>
    %cst_50 = arith.constant 3.200000e+01 : f32
    %134 = vector.broadcast %cst_50 : f32 to vector<32x1xf32>
    %135 = arith.divf %133, %134 : vector<32x1xf32>
    %136 = vector.broadcast %128 : vector<32x1xf32> to vector<32x32xf32>
    %137 = arith.subf %109, %136 : vector<32x32xf32>
    %cst_51 = arith.constant 9.99999974E-6 : f32
    %138 = vector.broadcast %cst_51 : f32 to vector<32x1xf32>
    %139 = arith.addf %135, %138 : vector<32x1xf32>
    %140 = math.rsqrt %139 : vector<32x1xf32>
    %141 = vector.broadcast %140 : vector<32x1xf32> to vector<32x32xf32>
    %142 = arith.mulf %137, %141 : vector<32x32xf32>
    %143 = vector.broadcast %113 : vector<1x32xf32> to vector<32x32xf32>
    %144 = arith.mulf %142, %143 : vector<32x32xf32>
    %145 = vector.broadcast %114 : vector<1x32xf32> to vector<32x32xf32>
    %146 = arith.addf %144, %145 : vector<32x32xf32>
    %cst_52 = arith.constant dense<0.000000e+00> : vector<32x128xf32>
    %147 = tpu.matmul %146, %120, %cst_52 {dimension_numbers = #tpu.dot_dimension_numbers<[1], [0], [0], [1], [0, 0, 1, 1], [], []>} : vector<32x32xf32>, vector<32x128xf32>, vector<32x128xf32> -> vector<32x128xf32>
    %148 = vector.extract_strided_slice %147 {offsets = [0, 0], sizes = [32, 32], strides = [1, 1]} : vector<32x128xf32> to vector<32x32xf32>
    %149 = vector.extract_strided_slice %147 {offsets = [0, 32], sizes = [32, 32], strides = [1, 1]} : vector<32x128xf32> to vector<32x32xf32>
    %150 = vector.extract_strided_slice %147 {offsets = [0, 64], sizes = [32, 32], strides = [1, 1]} : vector<32x128xf32> to vector<32x32xf32>
    %151 = tpu.transpose %149, [1, 0] : vector<32x32xf32> -> vector<32x32xf32>
    %152 = tpu.concatenate %151, %151, %151, %151 in 1 : vector<32x32xf32>, vector<32x32xf32>, vector<32x32xf32>, vector<32x32xf32> -> vector<32x128xf32>
    %153 = arith.mulf %152, %1 : vector<32x128xf32>
    %cst_53 = arith.constant dense<0.000000e+00> : vector<32x128xf32>
    %154 = tpu.matmul %148, %153, %cst_53 {dimension_numbers = #tpu.dot_dimension_numbers<[1], [0], [0], [1], [0, 0, 1, 1], [], []>} : vector<32x32xf32>, vector<32x128xf32>, vector<32x128xf32> -> vector<32x128xf32>
    %cst_54 = arith.constant 0.176776692 : f32
    %155 = vector.broadcast %cst_54 : f32 to vector<32x128xf32>
    %156 = arith.mulf %154, %155 : vector<32x128xf32>
    %157 = arith.addf %156, %0 : vector<32x128xf32>
    %cst_55 = arith.constant dense<0xFF800000> : vector<32xf32>
    %158 = vector.multi_reduction <maximumf>, %157, %cst_55 [1] : vector<32x128xf32> to vector<32xf32>
    %159 = vector.shape_cast %158 : vector<32xf32> to vector<32x1xf32>
    %160 = vector.broadcast %159 : vector<32x1xf32> to vector<32x128xf32>
    %161 = arith.subf %157, %160 : vector<32x128xf32>
    %162 = math.exp %161 : vector<32x128xf32>
    %163 = tpu.concatenate %150, %150, %150, %150 in 0 : vector<32x32xf32>, vector<32x32xf32>, vector<32x32xf32>, vector<32x32xf32> -> vector<128x32xf32>
    %164 = arith.mulf %163, %2 : vector<128x32xf32>
    %cst_56 = arith.constant dense<0.000000e+00> : vector<32x32xf32>
    %165 = tpu.matmul %162, %164, %cst_56 {dimension_numbers = #tpu.dot_dimension_numbers<[1], [0], [0], [1], [0, 0, 1, 1], [], []>} : vector<32x128xf32>, vector<128x32xf32>, vector<32x32xf32> -> vector<32x32xf32>
    %cst_57 = arith.constant dense<0.000000e+00> : vector<32x32xf32>
    %166 = tpu.matmul %162, %2, %cst_57 {dimension_numbers = #tpu.dot_dimension_numbers<[1], [0], [0], [1], [0, 0, 1, 1], [], []>} : vector<32x128xf32>, vector<128x32xf32>, vector<32x32xf32> -> vector<32x32xf32>
    %167 = tpu.reciprocal %166 : vector<32x32xf32> -> vector<32x32xf32>
    %168 = arith.mulf %165, %167 : vector<32x32xf32>
    %169 = vector.extract_strided_slice %120 {offsets = [0, 96], sizes = [32, 32], strides = [1, 1]} : vector<32x128xf32> to vector<32x32xf32>
    %cst_58 = arith.constant dense<0.000000e+00> : vector<32x32xf32>
    %170 = tpu.matmul %168, %169, %cst_58 {dimension_numbers = #tpu.dot_dimension_numbers<[1], [0], [0], [1], [0, 0, 1, 1], [], []>} : vector<32x32xf32>, vector<32x32xf32>, vector<32x32xf32> -> vector<32x32xf32>
    %171 = arith.addf %109, %170 : vector<32x32xf32>
    %172 = vector.broadcast %117 : vector<1x32xf32> to vector<32x32xf32>
    %173 = arith.addf %171, %172 : vector<32x32xf32>
    %cst_59 = arith.constant dense<0.000000e+00> : vector<32xf32>
    %174 = vector.multi_reduction <add>, %173, %cst_59 [1] : vector<32x32xf32> to vector<32xf32>
    %175 = vector.shape_cast %174 : vector<32xf32> to vector<32x1xf32>
    %cst_60 = arith.constant 3.200000e+01 : f32
    %176 = vector.broadcast %cst_60 : f32 to vector<32x1xf32>
    %177 = arith.divf %175, %176 : vector<32x1xf32>
    %178 = vector.broadcast %177 : vector<32x1xf32> to vector<32x32xf32>
    %179 = arith.subf %173, %178 : vector<32x32xf32>
    %180 = arith.mulf %179, %179 : vector<32x32xf32>
    %cst_61 = arith.constant dense<0.000000e+00> : vector<32xf32>
    %181 = vector.multi_reduction <add>, %180, %cst_61 [1] : vector<32x32xf32> to vector<32xf32>
    %182 = vector.shape_cast %181 : vector<32xf32> to vector<32x1xf32>
    %cst_62 = arith.constant 3.200000e+01 : f32
    %183 = vector.broadcast %cst_62 : f32 to vector<32x1xf32>
    %184 = arith.divf %182, %183 : vector<32x1xf32>
    %185 = vector.broadcast %177 : vector<32x1xf32> to vector<32x32xf32>
    %186 = arith.subf %173, %185 : vector<32x32xf32>
    %cst_63 = arith.constant 9.99999974E-6 : f32
    %187 = vector.broadcast %cst_63 : f32 to vector<32x1xf32>
    %188 = arith.addf %184, %187 : vector<32x1xf32>
    %189 = math.rsqrt %188 : vector<32x1xf32>
    %190 = vector.broadcast %189 : vector<32x1xf32> to vector<32x32xf32>
    %191 = arith.mulf %186, %190 : vector<32x32xf32>
    %192 = vector.broadcast %115 : vector<1x32xf32> to vector<32x32xf32>
    %193 = arith.mulf %191, %192 : vector<32x32xf32>
    %194 = vector.broadcast %116 : vector<1x32xf32> to vector<32x32xf32>
    %195 = arith.addf %193, %194 : vector<32x32xf32>
    %cst_64 = arith.constant dense<0.000000e+00> : vector<32x128xf32>
    %196 = tpu.matmul %195, %122, %cst_64 {dimension_numbers = #tpu.dot_dimension_numbers<[1], [0], [0], [1], [0, 0, 1, 1], [], []>} : vector<32x32xf32>, vector<32x128xf32>, vector<32x128xf32> -> vector<32x128xf32>
    %197 = vector.broadcast %112 : vector<1x128xf32> to vector<32x128xf32>
    %198 = arith.addf %196, %197 : vector<32x128xf32>
    %cst_65 = arith.constant 0.000000e+00 : f32
    %199 = vector.broadcast %cst_65 : f32 to vector<32x128xf32>
    %200 = arith.maximumf %198, %199 : vector<32x128xf32>
    %cst_66 = arith.constant dense<0.000000e+00> : vector<32x32xf32>
    %201 = tpu.matmul %200, %124, %cst_66 {dimension_numbers = #tpu.dot_dimension_numbers<[1], [0], [0], [1], [0, 0, 1, 1], [], []>} : vector<32x128xf32>, vector<128x32xf32>, vector<32x32xf32> -> vector<32x32xf32>
    %202 = arith.addf %173, %201 : vector<32x32xf32>
    %203 = vector.broadcast %118 : vector<1x32xf32> to vector<32x32xf32>
    %204 = arith.addf %202, %203 : vector<32x32xf32>
    %205 = vector.extract_strided_slice %3 {offsets = [6, 0], sizes = [1, 128], strides = [1, 1]} : vector<8x128xf32> to vector<1x128xf32>
    %206 = vector.extract_strided_slice %3 {offsets = [7, 0], sizes = [1, 128], strides = [1, 1]} : vector<8x128xf32> to vector<1x128xf32>
    %207 = vector.extract_strided_slice %205 {offsets = [0, 0], sizes = [1, 32], strides = [1, 1]} : vector<1x128xf32> to vector<1x32xf32>
    %208 = vector.extract_strided_slice %205 {offsets = [0, 32], sizes = [1, 32], strides = [1, 1]} : vector<1x128xf32> to vector<1x32xf32>
    %cst_67 = arith.constant dense<0.000000e+00> : vector<32xf32>
    %209 = vector.multi_reduction <add>, %204, %cst_67 [1] : vector<32x32xf32> to vector<32xf32>
    %210 = vector.shape_cast %209 : vector<32xf32> to vector<32x1xf32>
    %cst_68 = arith.constant 3.200000e+01 : f32
    %211 = vector.broadcast %cst_68 : f32 to vector<32x1xf32>
    %212 = arith.divf %210, %211 : vector<32x1xf32>
    %213 = vector.broadcast %212 : vector<32x1xf32> to vector<32x32xf32>
    %214 = arith.subf %204, %213 : vector<32x32xf32>
    %215 = arith.mulf %214, %214 : vector<32x32xf32>
    %cst_69 = arith.constant dense<0.000000e+00> : vector<32xf32>
    %216 = vector.multi_reduction <add>, %215, %cst_69 [1] : vector<32x32xf32> to vector<32xf32>
    %217 = vector.shape_cast %216 : vector<32xf32> to vector<32x1xf32>
    %cst_70 = arith.constant 3.200000e+01 : f32
    %218 = vector.broadcast %cst_70 : f32 to vector<32x1xf32>
    %219 = arith.divf %217, %218 : vector<32x1xf32>
    %220 = vector.broadcast %212 : vector<32x1xf32> to vector<32x32xf32>
    %221 = arith.subf %204, %220 : vector<32x32xf32>
    %cst_71 = arith.constant 9.99999974E-6 : f32
    %222 = vector.broadcast %cst_71 : f32 to vector<32x1xf32>
    %223 = arith.addf %219, %222 : vector<32x1xf32>
    %224 = math.rsqrt %223 : vector<32x1xf32>
    %225 = vector.broadcast %224 : vector<32x1xf32> to vector<32x32xf32>
    %226 = arith.mulf %221, %225 : vector<32x32xf32>
    %227 = vector.broadcast %207 : vector<1x32xf32> to vector<32x32xf32>
    %228 = arith.mulf %226, %227 : vector<32x32xf32>
    %229 = vector.broadcast %208 : vector<1x32xf32> to vector<32x32xf32>
    %230 = arith.addf %228, %229 : vector<32x32xf32>
    %c4 = arith.constant 4 : index
    %c0_72 = arith.constant 0 : index
    %c0_73 = arith.constant 0 : index
    %231 = vector.load %arg4[%c4, %c0_72, %c0_73] : memref<5x32x128xf32, #tpu.memory_space<vmem>>, vector<1x32x128xf32>
    %232 = vector.shape_cast %231 : vector<1x32x128xf32> to vector<32x128xf32>
    %cst_74 = arith.constant dense<0.000000e+00> : vector<32x128xf32>
    %233 = tpu.matmul %230, %232, %cst_74 {dimension_numbers = #tpu.dot_dimension_numbers<[1], [0], [0], [1], [0, 0, 1, 1], [], []>} : vector<32x32xf32>, vector<32x128xf32>, vector<32x128xf32> -> vector<32x128xf32>
    %234 = vector.broadcast %206 : vector<1x128xf32> to vector<32x128xf32>
    %235 = arith.addf %233, %234 : vector<32x128xf32>
    %c0_75 = arith.constant 0 : index
    %c0_76 = arith.constant 0 : index
    %236 = vector.load %arg7[%c0_75, %c0_76] : memref<32x128xf32, #tpu.memory_space<vmem>>, vector<32x128xf32>
    tpu.vector_store %arg7[%c0_75, %c0_76], %235 {strides = array<i32>} : memref<32x128xf32, #tpu.memory_space<vmem>>, vector<32x128xf32>,
    %cst_77 = arith.constant dense<0xFF800000> : vector<32xf32>
    %237 = vector.multi_reduction <maximumf>, %235, %cst_77 [1] : vector<32x128xf32> to vector<32xf32>
    %238 = vector.shape_cast %237 : vector<32xf32> to vector<32x1xf32>
    %239 = vector.broadcast %238 : vector<32x1xf32> to vector<32x128xf32>
    %240 = arith.subf %235, %239 : vector<32x128xf32>
    %241 = math.exp %240 : vector<32x128xf32>
    %cst_78 = arith.constant dense<0.000000e+00> : vector<32xf32>
    %242 = vector.multi_reduction <add>, %241, %cst_78 [1] : vector<32x128xf32> to vector<32xf32>
    %243 = vector.shape_cast %242 : vector<32xf32> to vector<32x1xf32>
    %244 = math.log %243 : vector<32x1xf32>
    %245 = arith.addf %244, %238 : vector<32x1xf32>
    %246 = tpu.iota {dimensions = array<i32: 1>} : vector<32x128xi32>
    %c0_79 = arith.constant 0 : index
    %c0_80 = arith.constant 0 : index
    %247 = vector.load %arg1[%c0_79, %c0_80] : memref<32x1xi32, #tpu.memory_space<vmem>>, vector<32x1xi32>
    %248 = vector.broadcast %247 : vector<32x1xi32> to vector<32x128xi32>
    %249 = arith.cmpi eq, %246, %248 : vector<32x128xi32>
    %cst_81 = arith.constant 0.000000e+00 : f32
    %250 = vector.broadcast %cst_81 : f32 to vector<32x128xf32>
    %251 = arith.select %249, %235, %250 : vector<32x128xi1>, vector<32x128xf32>
    %cst_82 = arith.constant dense<0.000000e+00> : vector<32xf32>
    %252 = vector.multi_reduction <add>, %251, %cst_82 [1] : vector<32x128xf32> to vector<32xf32>
    %253 = vector.shape_cast %252 : vector<32xf32> to vector<32x1xf32>
    %254 = arith.subf %245, %253 : vector<32x1xf32>
    %c0_83 = arith.constant 0 : index
    %c0_84 = arith.constant 0 : index
    %255 = vector.load %arg8[%c0_83, %c0_84] : memref<32x1xf32, #tpu.memory_space<vmem>>, vector<32x1xf32>
    tpu.vector_store %arg8[%c0_83, %c0_84], %254 {strides = array<i32>} : memref<32x1xf32, #tpu.memory_space<vmem>>, vector<32x1xf32>,
    return
  }
}

</mosaic_0001>

<llo_original>
// kernel: model_forward.1
$region0: #{model_forward.1}
  #allocation0 [shape = 'u32[]', space=smem, size = 0x4, offset = 0x4, fixed_abs, tag = 'smem constant byte address 0x4 - core index']
  #allocation1 [shape = 'u32[144,128]{1,0:T(1,128)}', space=vmem, size = 0x12000, scoped, tag = 'internal scratch']
  %s0 = inlined_call_operand.vmem [shape: s32[32,1], index: 0, kind: input, shape index: {}]
  %s1 = inlined_call_operand.vmem [shape: s32[32,1], index: 1, kind: input, shape index: {}]
  %s2 = inlined_call_operand.vmem [shape: f32[192,128], index: 2, kind: input, shape index: {}]
  %s3 = inlined_call_operand.vmem [shape: f32[32,32], index: 3, kind: input, shape index: {}]
  %s4 = inlined_call_operand.vmem [shape: f32[5,32,128], index: 4, kind: input, shape index: {}]
  %s5 = inlined_call_operand.vmem [shape: f32[3,128,32], index: 5, kind: input, shape index: {}]
  %s6 = inlined_call_operand.vmem [shape: f32[8,128], index: 6, kind: input, shape index: {}]
  %s7 = inlined_call_operand.hbm [shape: f32[32,128], index: 7, kind: output, shape index: {0}]
  %s8 = inlined_call_operand.vmem [shape: f32[32,1], index: 8, kind: output, shape index: {1}]
  %9 = xla_tuple %s7, %s8
  %s10 = sld [smem:[#allocation0]]
  $region46: #{model_forward.1} parent=0
    _
  %s12 = ssub.s32 1, %s10
  %s13 = scalar_select 0, %s12, %s10
  $region1: #{model_forward.1} parent=0
    #allocation2 [shape = 'u8[16384]{0}', space=vmem, size = 0x4000, scoped, tag = 'output window, operand 0, single buffered']
    #allocation3 [shape = 's32[1]{0}', space=sflag, size = 0x4, scoped, tag = 'scoped memory for model_forward.1']
    %14 = vsyncpa [#allocation3], 0
    // Predicated region
    $region2: #{model_forward.1} parent=1 // pred_check
      _
    $region3: #{model_forward.1} parent=1 // pred_check_branch
      %16 = sbr.rel (0) target = $region5
    $region4: #{model_forward.1} parent=1 // pred_region
      _
    $region5: #{model_forward.1} parent=1 // pred_fallthru
      _
    // Predicated region
    $region6: #{model_forward.1} parent=1 // pred_check
      _
    $region7: #{model_forward.1} parent=1 // pred_check_branch
      %18 = sbr.rel (0) target = $region9
    $region8: #{model_forward.1} parent=1 // pred_region
      _
    $region9: #{model_forward.1} parent=1 // pred_fallthru
      _
    // Predicated region
    $region10: #{model_forward.1} parent=1 // pred_check
      _
    $region11: #{model_forward.1} parent=1 // pred_check_branch
      %20 = sbr.rel (0) target = $region13
    $region12: #{model_forward.1} parent=1 // pred_region
      _
    $region13: #{model_forward.1} parent=1 // pred_fallthru
      _
    // Predicated region
    $region14: #{model_forward.1} parent=1 // pred_check
      _
    $region15: #{model_forward.1} parent=1 // pred_check_branch
      %22 = sbr.rel (0) target = $region17
    $region16: #{model_forward.1} parent=1 // pred_region
      _
    $region17: #{model_forward.1} parent=1 // pred_fallthru
      _
    // Predicated region
    $region18: #{model_forward.1} parent=1 // pred_check
      _
    $region19: #{model_forward.1} parent=1 // pred_check_branch
      %24 = sbr.rel (0) target = $region21
    $region20: #{model_forward.1} parent=1 // pred_region
      _
    $region21: #{model_forward.1} parent=1 // pred_fallthru
      _
    // Predicated region
    $region22: #{model_forward.1} parent=1 // pred_check
      _
    $region23: #{model_forward.1} parent=1 // pred_check_branch
      %26 = sbr.rel (0) target = $region25
    $region24: #{model_forward.1} parent=1 // pred_region
      _
    $region25: #{model_forward.1} parent=1 // pred_fallthru
      _
    // Predicated region
    $region26: #{model_forward.1} parent=1 // pred_check
      _
    $region27: #{model_forward.1} parent=1 // pred_check_branch
      %28 = sbr.rel (0) target = $region29
    $region28: #{model_forward.1} parent=1 // pred_region
      _
    $region29: #{model_forward.1} parent=1 // pred_fallthru
      _
    %v29 = vld [vmem:[%s2] sm:$0xff]
    %v30 = vld [vmem:[%s2 + $0x8] sm:$0xff]
    %v31 = vld [vmem:[%s2 + $0x10] sm:$0xff]
    %v32 = vld [vmem:[%s2 + $0x18] sm:$0xff]
    %v33 = vld [vmem:[%s2 + $0x20] sm:$0xff]
    %v34 = vld [vmem:[%s2 + $0x28] sm:$0xff]
    %v35 = vld [vmem:[%s2 + $0x30] sm:$0xff]
    %v36 = vld [vmem:[%s2 + $0x38] sm:$0xff]
    %v37 = vld [vmem:[%s2 + $0x40] sm:$0xff]
    %v38 = vld [vmem:[%s2 + $0x48] sm:$0xff]
    %v39 = vld [vmem:[%s2 + $0x50] sm:$0xff]
    %v40 = vld [vmem:[%s2 + $0x58] sm:$0xff]
    %v41 = vld [vmem:[%s2 + $0x60] sm:$0xff]
    %v42 = vld [vmem:[%s2 + $0x68] sm:$0xff]
    %v43 = vld [vmem:[%s2 + $0x70] sm:$0xff]
    %v44 = vld [vmem:[%s2 + $0x78] sm:$0xff]
    %v45 = vld [vmem:[%s2 + $0x80] sm:$0xff]
    %v46 = vld [vmem:[%s2 + $0x88] sm:$0xff]
    %v47 = vld [vmem:[%s2 + $0x90] sm:$0xff]
    %v48 = vld [vmem:[%s2 + $0x98] sm:$0xff]
    %v49 = vld [vmem:[%s2 + $0xa0] sm:$0xff]
    %v50 = vld [vmem:[%s2 + $0xa8] sm:$0xff]
    %v51 = vld [vmem:[%s2 + $0xb0] sm:$0xff]
    %v52 = vld [vmem:[%s2 + $0xb8] sm:$0xff]
    %v53 = vld [vmem:[%s6] sm:$0xff]
    %v54 = vlaneseq
    %v55 = vand.u32 %v54, 127
    %v56 = vld [vmem:[%s0] sm:$0xff]
    %v57 = vld [vmem:[%s0 + $0x8] sm:$0xff]
    %v58 = vld [vmem:[%s0 + $0x10] sm:$0xff]
    %v59 = vld [vmem:[%s0 + $0x18] sm:$0xff]
    %60 = vset.pattern.permute.xlu0 0
    %61 = vperm.xlu0 %60, %v56
    %v62 = vpop.permute.xlu0 %61
    %63 = vset.pattern.permute.xlu0 0
    %64 = vperm.xlu0 %63, %v57
    %v65 = vpop.permute.xlu0 %64
    %66 = vset.pattern.permute.xlu0 0
    %67 = vperm.xlu0 %66, %v58
    %v68 = vpop.permute.xlu0 %67
    %69 = vset.pattern.permute.xlu0 0
    %70 = vperm.xlu0 %69, %v59
    %v71 = vpop.permute.xlu0 %70
    %vm72 = vcmp.eq.s32.totalorder %v55, %v62
    %vm73 = vcmp.eq.s32.totalorder %v55, %v65
    %vm74 = vcmp.eq.s32.totalorder %v55, %v68
    %vm75 = vcmp.eq.s32.totalorder %v55, %v71
    %v76 = vsel %vm72, 1, 0
    %v77 = vsel %vm73, 1, 0
    %v78 = vsel %vm74, 1, 0
    %v79 = vsel %vm75, 1, 0
    %v80 = vcvt.s32.f32 %v76
    %v81 = vcvt.s32.f32 %v77
    %v82 = vcvt.s32.f32 %v78
    %v83 = vcvt.s32.f32 %v79
    %v84 = vld [vmem:[%s5] sm:$0xff]
    %v85 = vld [vmem:[%s5 + $0x8] sm:$0xff]
    %v86 = vld [vmem:[%s5 + $0x10] sm:$0xff]
    %v87 = vld [vmem:[%s5 + $0x18] sm:$0xff]
    %v88 = vld [vmem:[%s5 + $0x20] sm:$0xff]
    %v89 = vld [vmem:[%s5 + $0x28] sm:$0xff]
    %v90 = vld [vmem:[%s5 + $0x30] sm:$0xff]
    %v91 = vld [vmem:[%s5 + $0x38] sm:$0xff]
    %v92 = vld [vmem:[%s5 + $0x40] sm:$0xff]
    %v93 = vld [vmem:[%s5 + $0x48] sm:$0xff]
    %v94 = vld [vmem:[%s5 + $0x50] sm:$0xff]
    %v95 = vld [vmem:[%s5 + $0x58] sm:$0xff]
    %v96 = vld [vmem:[%s5 + $0x60] sm:$0xff]
    %v97 = vld [vmem:[%s5 + $0x68] sm:$0xff]
    %v98 = vld [vmem:[%s5 + $0x70] sm:$0xff]
    %v99 = vld [vmem:[%s5 + $0x78] sm:$0xff]
    %v100 = vld [vmem:[%s3] sm:$0xff]
    %v101 = vld [vmem:[%s3 + $0x8] sm:$0xff]
    %v102 = vld [vmem:[%s3 + $0x10] sm:$0xff]
    %v103 = vld [vmem:[%s3 + $0x18] sm:$0xff]
    %104 = vmatprep.subr.mxu0 0.0
    %105 = vmatpush1.msra.mxu0 %v84
    %106 = vmatprep.subr.mxu0 0.0
    %107 = vmatpush1.msra.mxu0 %v85
    %108 = vmatprep.subr.mxu0 0.0
    %109 = vmatpush1.msra.mxu0 %v86
    %110 = vmatprep.subr.mxu0 0.0
    %111 = vmatpush1.msra.mxu0 %v87
    %112 = vmatprep.subr.mxu0 0.0
    %113 = vmatpush1.msra.mxu0 %v88
    %114 = vmatprep.subr.mxu0 0.0
    %115 = vmatpush1.msra.mxu0 %v89
    %116 = vmatprep.subr.mxu0 0.0
    %117 = vmatpush1.msra.mxu0 %v90
    %118 = vmatprep.subr.mxu0 0.0
    %119 = vmatpush1.msra.mxu0 %v91
    %120 = vmatprep.subr.mxu0 0.0
    %121 = vmatpush1.msra.mxu0 %v92
    %122 = vmatprep.subr.mxu0 0.0
    %123 = vmatpush1.msra.mxu0 %v93
    %124 = vmatprep.subr.mxu0 0.0
    %125 = vmatpush1.msra.mxu0 %v94
    %126 = vmatprep.subr.mxu0 0.0
    %127 = vmatpush1.msra.mxu0 %v95
    %128 = vmatprep.subr.mxu0 0.0
    %129 = vmatpush1.msra.mxu0 %v96
    %130 = vmatprep.subr.mxu0 0.0
    %131 = vmatpush1.msra.mxu0 %v97
    %132 = vmatprep.subr.mxu0 0.0
    %133 = vmatpush1.msra.mxu0 %v98
    %134 = vmatprep.subr.mxu0 0.0
    %135 = vmatpush1.msra.mxu0 %v99
    %136 = vmatprep.subr.mxu0 0.0
    %137 = vmatpush1.msra.mxu0 0.0
    %138 = vmatprep.subr.mxu0 0.0
    %139 = vmatpush1.msra.mxu0 0.0
    %140 = vmatprep.subr.mxu0 0.0
    %141 = vmatpush1.msra.mxu0 0.0
    %142 = vmatprep.subr.mxu0 0.0
    %143 = vmatpush1.msra.mxu0 0.0
    %144 = vmatprep.subr.mxu0 0.0
    %145 = vmatpush1.msra.mxu0 0.0
    %146 = vmatprep.subr.mxu0 0.0
    %147 = vmatpush1.msra.mxu0 0.0
    %148 = vmatprep.subr.mxu0 0.0
    %149 = vmatpush1.msra.mxu0 0.0
    %150 = vmatprep.subr.mxu0 0.0
    %151 = vmatpush1.msra.mxu0 0.0
    %152 = vmatprep.subr.mxu0 0.0
    %153 = vmatpush1.msra.mxu0 0.0
    %154 = vmatprep.subr.mxu0 0.0
    %155 = vmatpush1.msra.mxu0 0.0
    %156 = vmatprep.subr.mxu0 0.0
    %157 = vmatpush1.msra.mxu0 0.0
    %158 = vmatprep.subr.mxu0 0.0
    %159 = vmatpush1.msra.mxu0 0.0
    %160 = vmatprep.subr.mxu0 0.0
    %161 = vmatpush1.msra.mxu0 0.0
    %162 = vmatprep.subr.mxu0 0.0
    %163 = vmatpush1.msra.mxu0 0.0
    %164 = vmatprep.subr.mxu0 0.0
    %165 = vmatpush1.msra.mxu0 0.0
    %166 = vmatprep.subr.mxu0 0.0
    %167 = vmatpush1.msra.mxu0 0.0
    %168 = vmatprep.mubr.f32.mxu0 0.0
    %169 = vmatmul.mubr.f32.gmra.mrb[0].mxu0 %v80
    %v170 = vpop.f32.mrb[0].mxu0
    %v171 = vadd.f32 %v100, %v170
    %v172 = vpop.f32.mrb[0].mxu0
    %173 = vmatprep.mubr.f32.mxu0 0.0
    %174 = vmatmul.mubr.f32.gmra.mrb[0].mxu0 %v81
    %v175 = vpop.f32.mrb[0].mxu0
    %v176 = vadd.f32 %v101, %v175
    %v177 = vpop.f32.mrb[0].mxu0
    %178 = vmatprep.mubr.f32.mxu0 0.0
    %179 = vmatmul.mubr.f32.gmra.mrb[0].mxu0 %v82
    %v180 = vpop.f32.mrb[0].mxu0
    %v181 = vadd.f32 %v102, %v180
    %v182 = vpop.f32.mrb[0].mxu0
    %183 = vmatprep.mubr.f32.mxu0 0.0
    %184 = vmatmul.mubr.f32.gmra.mrb[0].mxu0 %v83
    %v185 = vpop.f32.mrb[0].mxu0
    %v186 = vadd.f32 %v103, %v185
    %v187 = vpop.f32.mrb[0].mxu0
    %188 = vdwg.mxu0
    %v189 = vld [vmem:[%s4] sm:$0xff]
    %v190 = vld [vmem:[%s4 + $0x8] sm:$0xff]
    %v191 = vld [vmem:[%s4 + $0x10] sm:$0xff]
    %v192 = vld [vmem:[%s4 + $0x18] sm:$0xff]
    %s193 = scalar_lea.vmem %s4, 64
    %v194 = vld [vmem:[%s193] sm:$0xff]
    %v195 = vld [vmem:[%s193 + $0x8] sm:$0xff]
    %v196 = vld [vmem:[%s193 + $0x10] sm:$0xff]
    %v197 = vld [vmem:[%s193 + $0x18] sm:$0xff]
    %s198 = scalar_lea.vmem %s5, 128
    %v199 = vld [vmem:[%s198] sm:$0xff]
    %v200 = vld [vmem:[%s198 + $0x8] sm:$0xff]
    %v201 = vld [vmem:[%s198 + $0x10] sm:$0xff]
    %v202 = vld [vmem:[%s198 + $0x18] sm:$0xff]
    %v203 = vld [vmem:[%s198 + $0x20] sm:$0xff]
    %v204 = vld [vmem:[%s198 + $0x28] sm:$0xff]
    %v205 = vld [vmem:[%s198 + $0x30] sm:$0xff]
    %v206 = vld [vmem:[%s198 + $0x38] sm:$0xff]
    %v207 = vld [vmem:[%s198 + $0x40] sm:$0xff]
    %v208 = vld [vmem:[%s198 + $0x48] sm:$0xff]
    %v209 = vld [vmem:[%s198 + $0x50] sm:$0xff]
    %v210 = vld [vmem:[%s198 + $0x58] sm:$0xff]
    %v211 = vld [vmem:[%s198 + $0x60] sm:$0xff]
    %v212 = vld [vmem:[%s198 + $0x68] sm:$0xff]
    %v213 = vld [vmem:[%s198 + $0x70] sm:$0xff]
    %v214 = vld [vmem:[%s198 + $0x78] sm:$0xff]
    %vm215 = vcmask 261120
    %v216 = vsel %vm215, %v171, 0.0
    %217 = vadd.xlane.f32.xlu0 %v216
    %v218 = vpop.xlane.xlu0 %217
    %v219 = vsel %vm215, %v176, 0.0
    %220 = vadd.xlane.f32.xlu0 %v219
    %v221 = vpop.xlane.xlu0 %220
    %v222 = vsel %vm215, %v181, 0.0
    %223 = vadd.xlane.f32.xlu0 %v222
    %v224 = vpop.xlane.xlu0 %223
    %v225 = vsel %vm215, %v186, 0.0
    %226 = vadd.xlane.f32.xlu0 %v225
    %v227 = vpop.xlane.xlu0 %226
    %v228 = vrcp.pop 32.0
    %v229 = vmul.f32 %v218, %v228
    %v230 = vmul.f32 %v221, %v228
    %v231 = vmul.f32 %v224, %v228
    %v232 = vmul.f32 %v227, %v228
    %v233 = vsub.f32 %v171, %v229
    %v234 = vsub.f32 %v176, %v230
    %v235 = vsub.f32 %v181, %v231
    %v236 = vsub.f32 %v186, %v232
    %v237 = vmul.f32 %v233, %v233
    %v238 = vmul.f32 %v234, %v234
    %v239 = vmul.f32 %v235, %v235
    %v240 = vmul.f32 %v236, %v236
    %v241 = vsel %vm215, %v237, 0.0
    %242 = vadd.xlane.f32.xlu0 %v241
    %v243 = vpop.xlane.xlu0 %242
    %v244 = vsel %vm215, %v238, 0.0
    %245 = vadd.xlane.f32.xlu0 %v244
    %v246 = vpop.xlane.xlu0 %245
    %v247 = vsel %vm215, %v239, 0.0
    %248 = vadd.xlane.f32.xlu0 %v247
    %v249 = vpop.xlane.xlu0 %248
    %v250 = vsel %vm215, %v240, 0.0
    %251 = vadd.xlane.f32.xlu0 %v250
    %v252 = vpop.xlane.xlu0 %251
    %v253 = vmul.f32 %v243, %v228
    %v254 = vmul.f32 %v246, %v228
    %v255 = vmul.f32 %v249, %v228
    %v256 = vmul.f32 %v252, %v228
    %v257 = vadd.f32 %v253, 1e-05
    %v258 = vadd.f32 %v254, 1e-05
    %v259 = vadd.f32 %v255, 1e-05
    %v260 = vadd.f32 %v256, 1e-05
    %v261 = vrsqrt.pop %v257
    %v262 = vrsqrt.pop %v258
    %v263 = vrsqrt.pop %v259
    %v264 = vrsqrt.pop %v260
    %v265 = vmul.f32 %v233, %v261
    %v266 = vmul.f32 %v234, %v262
    %v267 = vmul.f32 %v235, %v263
    %v268 = vmul.f32 %v236, %v264
    %v269 = vlaneseq
    %v270 = vshrl.u32 %v269, 7
    %v271 = vsub.s32 0, %v270
    %v272 = vrot.slane %v53, %v271
    %v273 = vmul.f32 %v265, %v272
    %v274 = vmul.f32 %v266, %v272
    %v275 = vmul.f32 %v267, %v272
    %v276 = vmul.f32 %v268, %v272
    %278 = vrot.lane.b32.xlu0 %v272, 96
    %v279 = vpop.permute.xlu0 %278
    %v281 = vadd.f32 %v273, %v279
    %v282 = vadd.f32 %v274, %v279
    %v283 = vadd.f32 %v275, %v279
    %v284 = vadd.f32 %v276, %v279
    %v286 = vsel %vm215, %v281, 0
    %v289 = vsel %vm215, %v282, 0
    %v292 = vsel %vm215, %v283, 0
    %v295 = vsel %vm215, %v284, 0
    %297 = vmatprep.subr.mxu0 0.0
    %298 = vmatpush1.msra.mxu0 %v189
    %299 = vmatprep.subr.mxu0 0.0
    %300 = vmatpush1.msra.mxu0 %v190
    %301 = vmatprep.subr.mxu0 0.0
    %302 = vmatpush1.msra.mxu0 %v191
    %303 = vmatprep.subr.mxu0 0.0
    %304 = vmatpush1.msra.mxu0 %v192
    %305 = vmatprep.subr.mxu0 0.0
    %306 = vmatpush1.msra.mxu0 0.0
    %307 = vmatprep.subr.mxu0 0.0
    %308 = vmatpush1.msra.mxu0 0.0
    %309 = vmatprep.subr.mxu0 0.0
    %310 = vmatpush1.msra.mxu0 0.0
    %311 = vmatprep.subr.mxu0 0.0
    %312 = vmatpush1.msra.mxu0 0.0
    %313 = vmatprep.subr.mxu0 0.0
    %314 = vmatpush1.msra.mxu0 0.0
    %315 = vmatprep.subr.mxu0 0.0
    %316 = vmatpush1.msra.mxu0 0.0
    %317 = vmatprep.subr.mxu0 0.0
    %318 = vmatpush1.msra.mxu0 0.0
    %319 = vmatprep.subr.mxu0 0.0
    %320 = vmatpush1.msra.mxu0 0.0
    %321 = vmatprep.subr.mxu0 0.0
    %322 = vmatpush1.msra.mxu0 0.0
    %323 = vmatprep.subr.mxu0 0.0
    %324 = vmatpush1.msra.mxu0 0.0
    %325 = vmatprep.subr.mxu0 0.0
    %326 = vmatpush1.msra.mxu0 0.0
    %327 = vmatprep.subr.mxu0 0.0
    %328 = vmatpush1.msra.mxu0 0.0
    %329 = vmatprep.subr.mxu0 0.0
    %330 = vmatpush1.msra.mxu0 0.0
    %331 = vmatprep.subr.mxu0 0.0
    %332 = vmatpush1.msra.mxu0 0.0
    %333 = vmatprep.subr.mxu0 0.0
    %334 = vmatpush1.msra.mxu0 0.0
    %335 = vmatprep.subr.mxu0 0.0
    %336 = vmatpush1.msra.mxu0 0.0
    %337 = vmatprep.subr.mxu0 0.0
    %338 = vmatpush1.msra.mxu0 0.0
    %339 = vmatprep.subr.mxu0 0.0
    %340 = vmatpush1.msra.mxu0 0.0
    %341 = vmatprep.subr.mxu0 0.0
    %342 = vmatpush1.msra.mxu0 0.0
    %343 = vmatprep.subr.mxu0 0.0
    %344 = vmatpush1.msra.mxu0 0.0
    %345 = vmatprep.subr.mxu0 0.0
    %346 = vmatpush1.msra.mxu0 0.0
    %347 = vmatprep.subr.mxu0 0.0
    %348 = vmatpush1.msra.mxu0 0.0
    %349 = vmatprep.subr.mxu0 0.0
    %350 = vmatpush1.msra.mxu0 0.0
    %351 = vmatprep.subr.mxu0 0.0
    %352 = vmatpush1.msra.mxu0 0.0
    %353 = vmatprep.subr.mxu0 0.0
    %354 = vmatpush1.msra.mxu0 0.0
    %355 = vmatprep.subr.mxu0 0.0
    %356 = vmatpush1.msra.mxu0 0.0
    %357 = vmatprep.subr.mxu0 0.0
    %358 = vmatpush1.msra.mxu0 0.0
    %359 = vmatprep.subr.mxu0 0.0
    %360 = vmatpush1.msra.mxu0 0.0
    %361 = vmatprep.mubr.f32.mxu0 0.0
    %362 = vmatmul.mubr.f32.gmra.mrb[0].mxu0 %v286
    %v363 = vpop.f32.mrb[0].mxu0
    %v364 = vadd.f32 0.0, %v363
    %v365 = vpop.f32.mrb[0].mxu0
    %366 = vmatprep.mubr.f32.mxu0 0.0
    %367 = vmatmul.mubr.f32.gmra.mrb[0].mxu0 %v289
    %v368 = vpop.f32.mrb[0].mxu0
    %v369 = vadd.f32 0.0, %v368
    %v370 = vpop.f32.mrb[0].mxu0
    %371 = vmatprep.mubr.f32.mxu0 0.0
    %372 = vmatmul.mubr.f32.gmra.mrb[0].mxu0 %v292
    %v373 = vpop.f32.mrb[0].mxu0
    %v374 = vadd.f32 0.0, %v373
    %v375 = vpop.f32.mrb[0].mxu0
    %376 = vmatprep.mubr.f32.mxu0 0.0
    %377 = vmatmul.mubr.f32.gmra.mrb[0].mxu0 %v295
    %v378 = vpop.f32.mrb[0].mxu0
    %v379 = vadd.f32 0.0, %v378
    %v380 = vpop.f32.mrb[0].mxu0
    %381 = vdwg.mxu0
    %386 = vrot.lane.b32.xlu0 %v364, 96
    %v387 = vpop.permute.xlu0 %386
    %388 = vrot.lane.b32.xlu0 %v369, 96
    %v389 = vpop.permute.xlu0 %388
    %390 = vrot.lane.b32.xlu0 %v374, 96
    %v391 = vpop.permute.xlu0 %390
    %392 = vrot.lane.b32.xlu0 %v379, 96
    %v393 = vpop.permute.xlu0 %392
    %398 = vxpose.xlu0.b32.start [1/16] %v387, 128
    %399 = vxpose.xlu0.b32.cont [2/16] %v389, 128
    %400 = vxpose.xlu0.b32.cont [3/16] %v391, 128
    %401 = vxpose.xlu0.b32.cont [4/16] %v393, 128
    %402 = vxpose.xlu0.b32.cont [5/16] 0.0, 128
    %403 = vxpose.xlu0.b32.cont [6/16] 0.0, 128
    %404 = vxpose.xlu0.b32.cont [7/16] 0.0, 128
    %405 = vxpose.xlu0.b32.cont [8/16] 0.0, 128
    %406 = vxpose.xlu0.b32.cont [9/16] 0.0, 128
    %407 = vxpose.xlu0.b32.cont [10/16] 0.0, 128
    %408 = vxpose.xlu0.b32.cont [11/16] 0.0, 128
    %409 = vxpose.xlu0.b32.cont [12/16] 0.0, 128
    %410 = vxpose.xlu0.b32.cont [13/16] 0.0, 128
    %411 = vxpose.xlu0.b32.cont [14/16] 0.0, 128
    %412 = vxpose.xlu0.b32.cont [15/16] 0.0, 128
    %413 = vxpose.xlu0.b32.end [16/16] 0.0, 128
    %v414 = vpop.trf.xlu0
    %v415 = vpop.trf.xlu0
    %v416 = vpop.trf.xlu0
    %v417 = vpop.trf.xlu0
    %v418 = vpop.trf.xlu0
    %v419 = vpop.trf.xlu0
    %v420 = vpop.trf.xlu0
    %v421 = vpop.trf.xlu0
    %v422 = vpop.trf.xlu0
    %v423 = vpop.trf.xlu0
    %v424 = vpop.trf.xlu0
    %v425 = vpop.trf.xlu0
    %v426 = vpop.trf.xlu0
    %v427 = vpop.trf.xlu0
    %v428 = vpop.trf.xlu0
    %v429 = vpop.trf.xlu0
    %434 = vrot.lane.b32.xlu0 %v414, 32
    %v435 = vpop.permute.xlu0 %434
    %436 = vrot.lane.b32.xlu0 %v415, 32
    %v437 = vpop.permute.xlu0 %436
    %438 = vrot.lane.b32.xlu0 %v416, 32
    %v439 = vpop.permute.xlu0 %438
    %440 = vrot.lane.b32.xlu0 %v417, 32
    %v441 = vpop.permute.xlu0 %440
    %446 = vrot.lane.b32.xlu0 %v414, 64
    %v447 = vpop.permute.xlu0 %446
    %448 = vrot.lane.b32.xlu0 %v415, 64
    %v449 = vpop.permute.xlu0 %448
    %450 = vrot.lane.b32.xlu0 %v416, 64
    %v451 = vpop.permute.xlu0 %450
    %452 = vrot.lane.b32.xlu0 %v417, 64
    %v453 = vpop.permute.xlu0 %452
    %458 = vrot.lane.b32.xlu0 %v414, 96
    %v459 = vpop.permute.xlu0 %458
    %460 = vrot.lane.b32.xlu0 %v415, 96
    %v461 = vpop.permute.xlu0 %460
    %462 = vrot.lane.b32.xlu0 %v416, 96
    %v463 = vpop.permute.xlu0 %462
    %464 = vrot.lane.b32.xlu0 %v417, 96
    %v465 = vpop.permute.xlu0 %464
    %v470 = vsel %vm215, %v414, %v435
    %v471 = vsel %vm215, %v415, %v437
    %v472 = vsel %vm215, %v416, %v439
    %v473 = vsel %vm215, %v417, %v441
    %vm474 = vcmask 523264
    %v475 = vsel %vm474, %v470, %v447
    %v476 = vsel %vm474, %v471, %v449
    %v477 = vsel %vm474, %v472, %v451
    %v478 = vsel %vm474, %v473, %v453
    %vm479 = vcmask 785408
    %v480 = vsel %vm479, %v475, %v459
    %v481 = vsel %vm479, %v476, %v461
    %v482 = vsel %vm479, %v477, %v463
    %v483 = vsel %vm479, %v478, %v465
    %v484 = vmul.f32 %v480, %v33
    %v485 = vmul.f32 %v481, %v34
    %v486 = vmul.f32 %v482, %v35
    %v487 = vmul.f32 %v483, %v36
    %v488 = vsel %vm215, %v364, 0
    %v490 = vsel %vm215, %v369, 0
    %v492 = vsel %vm215, %v374, 0
    %v494 = vsel %vm215, %v379, 0
    %496 = vmatprep.subr.mxu0 0.0
    %497 = vmatpush1.msra.mxu0 %v484
    %498 = vmatprep.subr.mxu0 0.0
    %499 = vmatpush1.msra.mxu0 %v485
    %500 = vmatprep.subr.mxu0 0.0
    %501 = vmatpush1.msra.mxu0 %v486
    %502 = vmatprep.subr.mxu0 0.0
    %503 = vmatpush1.msra.mxu0 %v487
    %504 = vmatprep.subr.mxu0 0.0
    %505 = vmatpush1.msra.mxu0 0.0
    %506 = vmatprep.subr.mxu0 0.0
    %507 = vmatpush1.msra.mxu0 0.0
    %508 = vmatprep.subr.mxu0 0.0
    %509 = vmatpush1.msra.mxu0 0.0
    %510 = vmatprep.subr.mxu0 0.0
    %511 = vmatpush1.msra.mxu0 0.0
    %512 = vmatprep.subr.mxu0 0.0
    %513 = vmatpush1.msra.mxu0 0.0
    %514 = vmatprep.subr.mxu0 0.0
    %515 = vmatpush1.msra.mxu0 0.0
    %516 = vmatprep.subr.mxu0 0.0
    %517 = vmatpush1.msra.mxu0 0.0
    %518 = vmatprep.subr.mxu0 0.0
    %519 = vmatpush1.msra.mxu0 0.0
    %520 = vmatprep.subr.mxu0 0.0
    %521 = vmatpush1.msra.mxu0 0.0
    %522 = vmatprep.subr.mxu0 0.0
    %523 = vmatpush1.msra.mxu0 0.0
    %524 = vmatprep.subr.mxu0 0.0
    %525 = vmatpush1.msra.mxu0 0.0
    %526 = vmatprep.subr.mxu0 0.0
    %527 = vmatpush1.msra.mxu0 0.0
    %528 = vmatprep.subr.mxu0 0.0
    %529 = vmatpush1.msra.mxu0 0.0
    %530 = vmatprep.subr.mxu0 0.0
    %531 = vmatpush1.msra.mxu0 0.0
    %532 = vmatprep.subr.mxu0 0.0
    %533 = vmatpush1.msra.mxu0 0.0
    %534 = vmatprep.subr.mxu0 0.0
    %535 = vmatpush1.msra.mxu0 0.0
    %536 = vmatprep.subr.mxu0 0.0
    %537 = vmatpush1.msra.mxu0 0.0
    %538 = vmatprep.subr.mxu0 0.0
    %539 = vmatpush1.msra.mxu0 0.0
    %540 = vmatprep.subr.mxu0 0.0
    %541 = vmatpush1.msra.mxu0 0.0
    %542 = vmatprep.subr.mxu0 0.0
    %543 = vmatpush1.msra.mxu0 0.0
    %544 = vmatprep.subr.mxu0 0.0
    %545 = vmatpush1.msra.mxu0 0.0
    %546 = vmatprep.subr.mxu0 0.0
    %547 = vmatpush1.msra.mxu0 0.0
    %548 = vmatprep.subr.mxu0 0.0
    %549 = vmatpush1.msra.mxu0 0.0
    %550 = vmatprep.subr.mxu0 0.0
    %551 = vmatpush1.msra.mxu0 0.0
    %552 = vmatprep.subr.mxu0 0.0
    %553 = vmatpush1.msra.mxu0 0.0
    %554 = vmatprep.subr.mxu0 0.0
    %555 = vmatpush1.msra.mxu0 0.0
    %556 = vmatprep.subr.mxu0 0.0
    %557 = vmatpush1.msra.mxu0 0.0
    %558 = vmatprep.subr.mxu0 0.0
    %559 = vmatpush1.msra.mxu0 0.0
    %560 = vmatprep.mubr.f32.mxu0 0.0
    %561 = vmatmul.mubr.f32.gmra.mrb[0].mxu0 %v488
    %v562 = vpop.f32.mrb[0].mxu0
    %v563 = vadd.f32 0.0, %v562
    %v564 = vpop.f32.mrb[0].mxu0
    %565 = vmatprep.mubr.f32.mxu0 0.0
    %566 = vmatmul.mubr.f32.gmra.mrb[0].mxu0 %v490
    %v567 = vpop.f32.mrb[0].mxu0
    %v568 = vadd.f32 0.0, %v567
    %v569 = vpop.f32.mrb[0].mxu0
    %570 = vmatprep.mubr.f32.mxu0 0.0
    %571 = vmatmul.mubr.f32.gmra.mrb[0].mxu0 %v492
    %v572 = vpop.f32.mrb[0].mxu0
    %v573 = vadd.f32 0.0, %v572
    %v574 = vpop.f32.mrb[0].mxu0
    %575 = vmatprep.mubr.f32.mxu0 0.0
    %576 = vmatmul.mubr.f32.gmra.mrb[0].mxu0 %v494
    %v577 = vpop.f32.mrb[0].mxu0
    %v578 = vadd.f32 0.0, %v577
    %v579 = vpop.f32.mrb[0].mxu0
    %580 = vdwg.mxu0
    %v581 = vmul.f32 %v563, 0.17677669
    %v582 = vmul.f32 %v568, 0.17677669
    %v583 = vmul.f32 %v573, 0.17677669
    %v584 = vmul.f32 %v578, 0.17677669
    %v585 = vadd.f32 %v581, %v29
    %v586 = vadd.f32 %v582, %v30
    %v587 = vadd.f32 %v583, %v31
    %v588 = vadd.f32 %v584, %v32
    %589 = vmax.xlane.f32.xlu0 %v585
    %v590 = vpop.xlane.xlu0 %589
    %591 = vmax.xlane.f32.xlu0 %v586
    %v592 = vpop.xlane.xlu0 %591
    %593 = vmax.xlane.f32.xlu0 %v587
    %v594 = vpop.xlane.xlu0 %593
    %595 = vmax.xlane.f32.xlu0 %v588
    %v596 = vpop.xlane.xlu0 %595
    %v597 = vsub.f32 %v585, %v590
    %v598 = vsub.f32 %v586, %v592
    %v599 = vsub.f32 %v587, %v594
    %v600 = vsub.f32 %v588, %v596
    %v601 = vmul.f32 %v597, 1.442695
    %v602 = vpow.pop %v601
    %v603 = vmul.f32 %v598, 1.442695
    %v604 = vpow.pop %v603
    %v605 = vmul.f32 %v599, 1.442695
    %v606 = vpow.pop %v605
    %v607 = vmul.f32 %v600, 1.442695
    %v608 = vpow.pop %v607
    %625 = vrot.lane.b32.xlu0 %v37, 64
    %v626 = vpop.permute.xlu0 %625
    %627 = vrot.lane.b32.xlu0 %v38, 64
    %v628 = vpop.permute.xlu0 %627
    %629 = vrot.lane.b32.xlu0 %v39, 64
    %v630 = vpop.permute.xlu0 %629
    %631 = vrot.lane.b32.xlu0 %v40, 64
    %v632 = vpop.permute.xlu0 %631
    %633 = vrot.lane.b32.xlu0 %v41, 64
    %v634 = vpop.permute.xlu0 %633
    %635 = vrot.lane.b32.xlu0 %v42, 64
    %v636 = vpop.permute.xlu0 %635
    %637 = vrot.lane.b32.xlu0 %v43, 64
    %v638 = vpop.permute.xlu0 %637
    %639 = vrot.lane.b32.xlu0 %v44, 64
    %v640 = vpop.permute.xlu0 %639
    %641 = vrot.lane.b32.xlu0 %v45, 64
    %v642 = vpop.permute.xlu0 %641
    %643 = vrot.lane.b32.xlu0 %v46, 64
    %v644 = vpop.permute.xlu0 %643
    %645 = vrot.lane.b32.xlu0 %v47, 64
    %v646 = vpop.permute.xlu0 %645
    %647 = vrot.lane.b32.xlu0 %v48, 64
    %v648 = vpop.permute.xlu0 %647
    %649 = vrot.lane.b32.xlu0 %v49, 64
    %v650 = vpop.permute.xlu0 %649
    %651 = vrot.lane.b32.xlu0 %v50, 64
    %v652 = vpop.permute.xlu0 %651
    %653 = vrot.lane.b32.xlu0 %v51, 64
    %v654 = vpop.permute.xlu0 %653
    %655 = vrot.lane.b32.xlu0 %v52, 64
    %v656 = vpop.permute.xlu0 %655
    %v673 = vmul.f32 %v364, %v626
    %v674 = vmul.f32 %v369, %v628
    %v675 = vmul.f32 %v374, %v630
    %v676 = vmul.f32 %v379, %v632
    %v677 = vmul.f32 %v364, %v634
    %v678 = vmul.f32 %v369, %v636
    %v679 = vmul.f32 %v374, %v638
    %v680 = vmul.f32 %v379, %v640
    %v681 = vmul.f32 %v364, %v642
    %v682 = vmul.f32 %v369, %v644
    %v683 = vmul.f32 %v374, %v646
    %v684 = vmul.f32 %v379, %v648
    %v685 = vmul.f32 %v364, %v650
    %v686 = vmul.f32 %v369, %v652
    %v687 = vmul.f32 %v374, %v654
    %v688 = vmul.f32 %v379, %v656
    %705 = vrot.lane.b32.xlu0 %v673, 64
    %v706 = vpop.permute.xlu0 %705
    %707 = vrot.lane.b32.xlu0 %v674, 64
    %v708 = vpop.permute.xlu0 %707
    %709 = vrot.lane.b32.xlu0 %v675, 64
    %v710 = vpop.permute.xlu0 %709
    %711 = vrot.lane.b32.xlu0 %v676, 64
    %v712 = vpop.permute.xlu0 %711
    %713 = vrot.lane.b32.xlu0 %v677, 64
    %v714 = vpop.permute.xlu0 %713
    %715 = vrot.lane.b32.xlu0 %v678, 64
    %v716 = vpop.permute.xlu0 %715
    %717 = vrot.lane.b32.xlu0 %v679, 64
    %v718 = vpop.permute.xlu0 %717
    %719 = vrot.lane.b32.xlu0 %v680, 64
    %v720 = vpop.permute.xlu0 %719
    %721 = vrot.lane.b32.xlu0 %v681, 64
    %v722 = vpop.permute.xlu0 %721
    %723 = vrot.lane.b32.xlu0 %v682, 64
    %v724 = vpop.permute.xlu0 %723
    %725 = vrot.lane.b32.xlu0 %v683, 64
    %v726 = vpop.permute.xlu0 %725
    %727 = vrot.lane.b32.xlu0 %v684, 64
    %v728 = vpop.permute.xlu0 %727
    %729 = vrot.lane.b32.xlu0 %v685, 64
    %v730 = vpop.permute.xlu0 %729
    %731 = vrot.lane.b32.xlu0 %v686, 64
    %v732 = vpop.permute.xlu0 %731
    %733 = vrot.lane.b32.xlu0 %v687, 64
    %v734 = vpop.permute.xlu0 %733
    %735 = vrot.lane.b32.xlu0 %v688, 64
    %v736 = vpop.permute.xlu0 %735
    %753 = vmatprep.subr.mxu0 0.0
    %754 = vmatpush1.msra.mxu0 %v706
    %755 = vmatprep.subr.mxu0 0.0
    %756 = vmatpush1.msra.mxu0 %v708
    %757 = vmatprep.subr.mxu0 0.0
    %758 = vmatpush1.msra.mxu0 %v710
    %759 = vmatprep.subr.mxu0 0.0
    %760 = vmatpush1.msra.mxu0 %v712
    %761 = vmatprep.subr.mxu0 0.0
    %762 = vmatpush1.msra.mxu0 %v714
    %763 = vmatprep.subr.mxu0 0.0
    %764 = vmatpush1.msra.mxu0 %v716
    %765 = vmatprep.subr.mxu0 0.0
    %766 = vmatpush1.msra.mxu0 %v718
    %767 = vmatprep.subr.mxu0 0.0
    %768 = vmatpush1.msra.mxu0 %v720
    %769 = vmatprep.subr.mxu0 0.0
    %770 = vmatpush1.msra.mxu0 %v722
    %771 = vmatprep.subr.mxu0 0.0
    %772 = vmatpush1.msra.mxu0 %v724
    %773 = vmatprep.subr.mxu0 0.0
    %774 = vmatpush1.msra.mxu0 %v726
    %775 = vmatprep.subr.mxu0 0.0
    %776 = vmatpush1.msra.mxu0 %v728
    %777 = vmatprep.subr.mxu0 0.0
    %778 = vmatpush1.msra.mxu0 %v730
    %779 = vmatprep.subr.mxu0 0.0
    %780 = vmatpush1.msra.mxu0 %v732
    %781 = vmatprep.subr.mxu0 0.0
    %782 = vmatpush1.msra.mxu0 %v734
    %783 = vmatprep.subr.mxu0 0.0
    %784 = vmatpush1.msra.mxu0 %v736
    %785 = vmatprep.subr.mxu0 0.0
    %786 = vmatpush1.msra.mxu0 0.0
    %787 = vmatprep.subr.mxu0 0.0
    %788 = vmatpush1.msra.mxu0 0.0
    %789 = vmatprep.subr.mxu0 0.0
    %790 = vmatpush1.msra.mxu0 0.0
    %791 = vmatprep.subr.mxu0 0.0
    %792 = vmatpush1.msra.mxu0 0.0
    %793 = vmatprep.subr.mxu0 0.0
    %794 = vmatpush1.msra.mxu0 0.0
    %795 = vmatprep.subr.mxu0 0.0
    %796 = vmatpush1.msra.mxu0 0.0
    %797 = vmatprep.subr.mxu0 0.0
    %798 = vmatpush1.msra.mxu0 0.0
    %799 = vmatprep.subr.mxu0 0.0
    %800 = vmatpush1.msra.mxu0 0.0
    %801 = vmatprep.subr.mxu0 0.0
    %802 = vmatpush1.msra.mxu0 0.0
    %803 = vmatprep.subr.mxu0 0.0
    %804 = vmatpush1.msra.mxu0 0.0
    %805 = vmatprep.subr.mxu0 0.0
    %806 = vmatpush1.msra.mxu0 0.0
    %807 = vmatprep.subr.mxu0 0.0
    %808 = vmatpush1.msra.mxu0 0.0
    %809 = vmatprep.subr.mxu0 0.0
    %810 = vmatpush1.msra.mxu0 0.0
    %811 = vmatprep.subr.mxu0 0.0
    %812 = vmatpush1.msra.mxu0 0.0
    %813 = vmatprep.subr.mxu0 0.0
    %814 = vmatpush1.msra.mxu0 0.0
    %815 = vmatprep.subr.mxu0 0.0
    %816 = vmatpush1.msra.mxu0 0.0
    %817 = vmatprep.mubr.f32.mxu0 0.0
    %818 = vmatmul.mubr.f32.gmra.mrb[0].mxu0 %v602
    %v819 = vpop.f32.mrb[0].mxu0
    %v820 = vadd.f32 0.0, %v819
    %v821 = vpop.f32.mrb[0].mxu0
    %822 = vmatprep.mubr.f32.mxu0 0.0
    %823 = vmatmul.mubr.f32.gmra.mrb[0].mxu0 %v604
    %v824 = vpop.f32.mrb[0].mxu0
    %v825 = vadd.f32 0.0, %v824
    %v826 = vpop.f32.mrb[0].mxu0
    %827 = vmatprep.mubr.f32.mxu0 0.0
    %828 = vmatmul.mubr.f32.gmra.mrb[0].mxu0 %v606
    %v829 = vpop.f32.mrb[0].mxu0
    %v830 = vadd.f32 0.0, %v829
    %v831 = vpop.f32.mrb[0].mxu0
    %832 = vmatprep.mubr.f32.mxu0 0.0
    %833 = vmatmul.mubr.f32.gmra.mrb[0].mxu0 %v608
    %v834 = vpop.f32.mrb[0].mxu0
    %v835 = vadd.f32 0.0, %v834
    %v836 = vpop.f32.mrb[0].mxu0
    %837 = vdwg.mxu0
    %838 = vmatprep.subr.mxu0 0.0
    %839 = vmatpush1.msra.mxu0 %v37
    %840 = vmatprep.subr.mxu0 0.0
    %841 = vmatpush1.msra.mxu0 %v38
    %842 = vmatprep.subr.mxu0 0.0
    %843 = vmatpush1.msra.mxu0 %v39
    %844 = vmatprep.subr.mxu0 0.0
    %845 = vmatpush1.msra.mxu0 %v40
    %846 = vmatprep.subr.mxu0 0.0
    %847 = vmatpush1.msra.mxu0 %v41
    %848 = vmatprep.subr.mxu0 0.0
    %849 = vmatpush1.msra.mxu0 %v42
    %850 = vmatprep.subr.mxu0 0.0
    %851 = vmatpush1.msra.mxu0 %v43
    %852 = vmatprep.subr.mxu0 0.0
    %853 = vmatpush1.msra.mxu0 %v44
    %854 = vmatprep.subr.mxu0 0.0
    %855 = vmatpush1.msra.mxu0 %v45
    %856 = vmatprep.subr.mxu0 0.0
    %857 = vmatpush1.msra.mxu0 %v46
    %858 = vmatprep.subr.mxu0 0.0
    %859 = vmatpush1.msra.mxu0 %v47
    %860 = vmatprep.subr.mxu0 0.0
    %861 = vmatpush1.msra.mxu0 %v48
    %862 = vmatprep.subr.mxu0 0.0
    %863 = vmatpush1.msra.mxu0 %v49
    %864 = vmatprep.subr.mxu0 0.0
    %865 = vmatpush1.msra.mxu0 %v50
    %866 = vmatprep.subr.mxu0 0.0
    %867 = vmatpush1.msra.mxu0 %v51
    %868 = vmatprep.subr.mxu0 0.0
    %869 = vmatpush1.msra.mxu0 %v52
    %870 = vmatprep.subr.mxu0 0.0
    %871 = vmatpush1.msra.mxu0 0.0
    %872 = vmatprep.subr.mxu0 0.0
    %873 = vmatpush1.msra.mxu0 0.0
    %874 = vmatprep.subr.mxu0 0.0
    %875 = vmatpush1.msra.mxu0 0.0
    %876 = vmatprep.subr.mxu0 0.0
    %877 = vmatpush1.msra.mxu0 0.0
    %878 = vmatprep.subr.mxu0 0.0
    %879 = vmatpush1.msra.mxu0 0.0
    %880 = vmatprep.subr.mxu0 0.0
    %881 = vmatpush1.msra.mxu0 0.0
    %882 = vmatprep.subr.mxu0 0.0
    %883 = vmatpush1.msra.mxu0 0.0
    %884 = vmatprep.subr.mxu0 0.0
    %885 = vmatpush1.msra.mxu0 0.0
    %886 = vmatprep.subr.mxu0 0.0
    %887 = vmatpush1.msra.mxu0 0.0
    %888 = vmatprep.subr.mxu0 0.0
    %889 = vmatpush1.msra.mxu0 0.0
    %890 = vmatprep.subr.mxu0 0.0
    %891 = vmatpush1.msra.mxu0 0.0
    %892 = vmatprep.subr.mxu0 0.0
    %893 = vmatpush1.msra.mxu0 0.0
    %894 = vmatprep.subr.mxu0 0.0
    %895 = vmatpush1.msra.mxu0 0.0
    %896 = vmatprep.subr.mxu0 0.0
    %897 = vmatpush1.msra.mxu0 0.0
    %898 = vmatprep.subr.mxu0 0.0
    %899 = vmatpush1.msra.mxu0 0.0
    %900 = vmatprep.subr.mxu0 0.0
    %901 = vmatpush1.msra.mxu0 0.0
    %902 = vmatprep.mubr.f32.mxu0 0.0
    %903 = vmatmul.mubr.f32.gmra.mrb[0].mxu0 %v602
    %v904 = vpop.f32.mrb[0].mxu0
    %v905 = vadd.f32 0.0, %v904
    %v906 = vpop.f32.mrb[0].mxu0
    %907 = vmatprep.mubr.f32.mxu0 0.0
    %908 = vmatmul.mubr.f32.gmra.mrb[0].mxu0 %v604
    %v909 = vpop.f32.mrb[0].mxu0
    %v910 = vadd.f32 0.0, %v909
    %v911 = vpop.f32.mrb[0].mxu0
    %912 = vmatprep.mubr.f32.mxu0 0.0
    %913 = vmatmul.mubr.f32.gmra.mrb[0].mxu0 %v606
    %v914 = vpop.f32.mrb[0].mxu0
    %v915 = vadd.f32 0.0, %v914
    %v916 = vpop.f32.mrb[0].mxu0
    %917 = vmatprep.mubr.f32.mxu0 0.0
    %918 = vmatmul.mubr.f32.gmra.mrb[0].mxu0 %v608
    %v919 = vpop.f32.mrb[0].mxu0
    %v920 = vadd.f32 0.0, %v919
    %v921 = vpop.f32.mrb[0].mxu0
    %922 = vdwg.mxu0
    %v923 = vrcp.pop %v905
    %v924 = vrcp.pop %v910
    %v925 = vrcp.pop %v915
    %v926 = vrcp.pop %v920
    %v927 = vmul.f32 %v820, %v923
    %v928 = vmul.f32 %v825, %v924
    %v929 = vmul.f32 %v830, %v925
    %v930 = vmul.f32 %v835, %v926
    %935 = vrot.lane.b32.xlu0 %v189, 32
    %v936 = vpop.permute.xlu0 %935
    %937 = vrot.lane.b32.xlu0 %v190, 32
    %v938 = vpop.permute.xlu0 %937
    %939 = vrot.lane.b32.xlu0 %v191, 32
    %v940 = vpop.permute.xlu0 %939
    %941 = vrot.lane.b32.xlu0 %v192, 32
    %v942 = vpop.permute.xlu0 %941
    %v948 = vsel %vm215, %v927, 0
    %v951 = vsel %vm215, %v928, 0
    %v954 = vsel %vm215, %v929, 0
    %v957 = vsel %vm215, %v930, 0
    %959 = vmatprep.subr.mxu0 0.0
    %960 = vmatpush1.msra.mxu0 %v936
    %961 = vmatprep.subr.mxu0 0.0
    %962 = vmatpush1.msra.mxu0 %v938
    %963 = vmatprep.subr.mxu0 0.0
    %964 = vmatpush1.msra.mxu0 %v940
    %965 = vmatprep.subr.mxu0 0.0
    %966 = vmatpush1.msra.mxu0 %v942
    %967 = vmatprep.subr.mxu0 0.0
    %968 = vmatpush1.msra.mxu0 0.0
    %969 = vmatprep.subr.mxu0 0.0
    %970 = vmatpush1.msra.mxu0 0.0
    %971 = vmatprep.subr.mxu0 0.0
    %972 = vmatpush1.msra.mxu0 0.0
    %973 = vmatprep.subr.mxu0 0.0
    %974 = vmatpush1.msra.mxu0 0.0
    %975 = vmatprep.subr.mxu0 0.0
    %976 = vmatpush1.msra.mxu0 0.0
    %977 = vmatprep.subr.mxu0 0.0
    %978 = vmatpush1.msra.mxu0 0.0
    %979 = vmatprep.subr.mxu0 0.0
    %980 = vmatpush1.msra.mxu0 0.0
    %981 = vmatprep.subr.mxu0 0.0
    %982 = vmatpush1.msra.mxu0 0.0
    %983 = vmatprep.subr.mxu0 0.0
    %984 = vmatpush1.msra.mxu0 0.0
    %985 = vmatprep.subr.mxu0 0.0
    %986 = vmatpush1.msra.mxu0 0.0
    %987 = vmatprep.subr.mxu0 0.0
    %988 = vmatpush1.msra.mxu0 0.0
    %989 = vmatprep.subr.mxu0 0.0
    %990 = vmatpush1.msra.mxu0 0.0
    %991 = vmatprep.subr.mxu0 0.0
    %992 = vmatpush1.msra.mxu0 0.0
    %993 = vmatprep.subr.mxu0 0.0
    %994 = vmatpush1.msra.mxu0 0.0
    %995 = vmatprep.subr.mxu0 0.0
    %996 = vmatpush1.msra.mxu0 0.0
    %997 = vmatprep.subr.mxu0 0.0
    %998 = vmatpush1.msra.mxu0 0.0
    %999 = vmatprep.subr.mxu0 0.0
    %1000 = vmatpush1.msra.mxu0 0.0
    %1001 = vmatprep.subr.mxu0 0.0
    %1002 = vmatpush1.msra.mxu0 0.0
    %1003 = vmatprep.subr.mxu0 0.0
    %1004 = vmatpush1.msra.mxu0 0.0
    %1005 = vmatprep.subr.mxu0 0.0
    %1006 = vmatpush1.msra.mxu0 0.0
    %1007 = vmatprep.subr.mxu0 0.0
    %1008 = vmatpush1.msra.mxu0 0.0
    %1009 = vmatprep.subr.mxu0 0.0
    %1010 = vmatpush1.msra.mxu0 0.0
    %1011 = vmatprep.subr.mxu0 0.0
    %1012 = vmatpush1.msra.mxu0 0.0
    %1013 = vmatprep.subr.mxu0 0.0
    %1014 = vmatpush1.msra.mxu0 0.0
    %1015 = vmatprep.subr.mxu0 0.0
    %1016 = vmatpush1.msra.mxu0 0.0
    %1017 = vmatprep.subr.mxu0 0.0
    %1018 = vmatpush1.msra.mxu0 0.0
    %1019 = vmatprep.subr.mxu0 0.0
    %1020 = vmatpush1.msra.mxu0 0.0
    %1021 = vmatprep.subr.mxu0 0.0
    %1022 = vmatpush1.msra.mxu0 0.0
    %1023 = vmatprep.mubr.f32.mxu0 0.0
    %1024 = vmatmul.mubr.f32.gmra.mrb[0].mxu0 %v948
    %v1025 = vpop.f32.mrb[0].mxu0
    %v1026 = vadd.f32 0.0, %v1025
    %v1027 = vpop.f32.mrb[0].mxu0
    %1028 = vmatprep.mubr.f32.mxu0 0.0
    %1029 = vmatmul.mubr.f32.gmra.mrb[0].mxu0 %v951
    %v1030 = vpop.f32.mrb[0].mxu0
    %v1031 = vadd.f32 0.0, %v1030
    %v1032 = vpop.f32.mrb[0].mxu0
    %1033 = vmatprep.mubr.f32.mxu0 0.0
    %1034 = vmatmul.mubr.f32.gmra.mrb[0].mxu0 %v954
    %v1035 = vpop.f32.mrb[0].mxu0
    %v1036 = vadd.f32 0.0, %v1035
    %v1037 = vpop.f32.mrb[0].mxu0
    %1038 = vmatprep.mubr.f32.mxu0 0.0
    %1039 = vmatmul.mubr.f32.gmra.mrb[0].mxu0 %v957
    %v1040 = vpop.f32.mrb[0].mxu0
    %v1041 = vadd.f32 0.0, %v1040
    %v1042 = vpop.f32.mrb[0].mxu0
    %1043 = vdwg.mxu0
    %v1044 = vadd.f32 %v171, %v1026
    %v1045 = vadd.f32 %v176, %v1031
    %v1046 = vadd.f32 %v181, %v1036
    %v1047 = vadd.f32 %v186, %v1041
    %v1048 = vlaneseq
    %v1049 = vshrl.u32 %v1048, 7
    %v1050 = vsub.s32 1, %v1049
    %v1051 = vrot.slane %v53, %v1050
    %v1052 = vadd.f32 %v1044, %v1051
    %v1053 = vadd.f32 %v1045, %v1051
    %v1054 = vadd.f32 %v1046, %v1051
    %v1055 = vadd.f32 %v1047, %v1051
    %v1056 = vsel %vm215, %v1052, 0.0
    %1057 = vadd.xlane.f32.xlu0 %v1056
    %v1058 = vpop.xlane.xlu0 %1057
    %v1059 = vsel %vm215, %v1053, 0.0
    %1060 = vadd.xlane.f32.xlu0 %v1059
    %v1061 = vpop.xlane.xlu0 %1060
    %v1062 = vsel %vm215, %v1054, 0.0
    %1063 = vadd.xlane.f32.xlu0 %v1062
    %v1064 = vpop.xlane.xlu0 %1063
    %v1065 = vsel %vm215, %v1055, 0.0
    %1066 = vadd.xlane.f32.xlu0 %v1065
    %v1067 = vpop.xlane.xlu0 %1066
    %v1068 = vmul.f32 %v1058, %v228
    %v1069 = vmul.f32 %v1061, %v228
    %v1070 = vmul.f32 %v1064, %v228
    %v1071 = vmul.f32 %v1067, %v228
    %v1072 = vsub.f32 %v1052, %v1068
    %v1073 = vsub.f32 %v1053, %v1069
    %v1074 = vsub.f32 %v1054, %v1070
    %v1075 = vsub.f32 %v1055, %v1071
    %v1076 = vmul.f32 %v1072, %v1072
    %v1077 = vmul.f32 %v1073, %v1073
    %v1078 = vmul.f32 %v1074, %v1074
    %v1079 = vmul.f32 %v1075, %v1075
    %v1080 = vsel %vm215, %v1076, 0.0
    %1081 = vadd.xlane.f32.xlu0 %v1080
    %v1082 = vpop.xlane.xlu0 %1081
    %v1083 = vsel %vm215, %v1077, 0.0
    %1084 = vadd.xlane.f32.xlu0 %v1083
    %v1085 = vpop.xlane.xlu0 %1084
    %v1086 = vsel %vm215, %v1078, 0.0
    %1087 = vadd.xlane.f32.xlu0 %v1086
    %v1088 = vpop.xlane.xlu0 %1087
    %v1089 = vsel %vm215, %v1079, 0.0
    %1090 = vadd.xlane.f32.xlu0 %v1089
    %v1091 = vpop.xlane.xlu0 %1090
    %v1092 = vmul.f32 %v1082, %v228
    %v1093 = vmul.f32 %v1085, %v228
    %v1094 = vmul.f32 %v1088, %v228
    %v1095 = vmul.f32 %v1091, %v228
    %v1096 = vadd.f32 %v1092, 1e-05
    %v1097 = vadd.f32 %v1093, 1e-05
    %v1098 = vadd.f32 %v1094, 1e-05
    %v1099 = vadd.f32 %v1095, 1e-05
    %v1100 = vrsqrt.pop %v1096
    %v1101 = vrsqrt.pop %v1097
    %v1102 = vrsqrt.pop %v1098
    %v1103 = vrsqrt.pop %v1099
    %v1104 = vmul.f32 %v1072, %v1100
    %v1105 = vmul.f32 %v1073, %v1101
    %v1106 = vmul.f32 %v1074, %v1102
    %v1107 = vmul.f32 %v1075, %v1103
    %1108 = vrot.lane.b32.xlu0 %v272, 64
    %v1109 = vpop.permute.xlu0 %1108
    %v1111 = vmul.f32 %v1104, %v1109
    %v1112 = vmul.f32 %v1105, %v1109
    %v1113 = vmul.f32 %v1106, %v1109
    %v1114 = vmul.f32 %v1107, %v1109
    %1115 = vrot.lane.b32.xlu0 %v272, 32
    %v1116 = vpop.permute.xlu0 %1115
    %v1118 = vadd.f32 %v1111, %v1116
    %v1119 = vadd.f32 %v1112, %v1116
    %v1120 = vadd.f32 %v1113, %v1116
    %v1121 = vadd.f32 %v1114, %v1116
    %v1122 = vlaneseq
    %v1123 = vshrl.u32 %v1122, 7
    %v1124 = vsub.s32 2, %v1123
    %v1125 = vrot.slane %v53, %v1124
    %v1127 = vsel %vm215, %v1118, 0
    %v1130 = vsel %vm215, %v1119, 0
    %v1133 = vsel %vm215, %v1120, 0
    %v1136 = vsel %vm215, %v1121, 0
    %1138 = vmatprep.subr.mxu0 0.0
    %1139 = vmatpush1.msra.mxu0 %v194
    %1140 = vmatprep.subr.mxu0 0.0
    %1141 = vmatpush1.msra.mxu0 %v195
    %1142 = vmatprep.subr.mxu0 0.0
    %1143 = vmatpush1.msra.mxu0 %v196
    %1144 = vmatprep.subr.mxu0 0.0
    %1145 = vmatpush1.msra.mxu0 %v197
    %1146 = vmatprep.subr.mxu0 0.0
    %1147 = vmatpush1.msra.mxu0 0.0
    %1148 = vmatprep.subr.mxu0 0.0
    %1149 = vmatpush1.msra.mxu0 0.0
    %1150 = vmatprep.subr.mxu0 0.0
    %1151 = vmatpush1.msra.mxu0 0.0
    %1152 = vmatprep.subr.mxu0 0.0
    %1153 = vmatpush1.msra.mxu0 0.0
    %1154 = vmatprep.subr.mxu0 0.0
    %1155 = vmatpush1.msra.mxu0 0.0
    %1156 = vmatprep.subr.mxu0 0.0
    %1157 = vmatpush1.msra.mxu0 0.0
    %1158 = vmatprep.subr.mxu0 0.0
    %1159 = vmatpush1.msra.mxu0 0.0
    %1160 = vmatprep.subr.mxu0 0.0
    %1161 = vmatpush1.msra.mxu0 0.0
    %1162 = vmatprep.subr.mxu0 0.0
    %1163 = vmatpush1.msra.mxu0 0.0
    %1164 = vmatprep.subr.mxu0 0.0
    %1165 = vmatpush1.msra.mxu0 0.0
    %1166 = vmatprep.subr.mxu0 0.0
    %1167 = vmatpush1.msra.mxu0 0.0
    %1168 = vmatprep.subr.mxu0 0.0
    %1169 = vmatpush1.msra.mxu0 0.0
    %1170 = vmatprep.subr.mxu0 0.0
    %1171 = vmatpush1.msra.mxu0 0.0
    %1172 = vmatprep.subr.mxu0 0.0
    %1173 = vmatpush1.msra.mxu0 0.0
    %1174 = vmatprep.subr.mxu0 0.0
    %1175 = vmatpush1.msra.mxu0 0.0
    %1176 = vmatprep.subr.mxu0 0.0
    %1177 = vmatpush1.msra.mxu0 0.0
    %1178 = vmatprep.subr.mxu0 0.0
    %1179 = vmatpush1.msra.mxu0 0.0
    %1180 = vmatprep.subr.mxu0 0.0
    %1181 = vmatpush1.msra.mxu0 0.0
    %1182 = vmatprep.subr.mxu0 0.0
    %1183 = vmatpush1.msra.mxu0 0.0
    %1184 = vmatprep.subr.mxu0 0.0
    %1185 = vmatpush1.msra.mxu0 0.0
    %1186 = vmatprep.subr.mxu0 0.0
    %1187 = vmatpush1.msra.mxu0 0.0
    %1188 = vmatprep.subr.mxu0 0.0
    %1189 = vmatpush1.msra.mxu0 0.0
    %1190 = vmatprep.subr.mxu0 0.0
    %1191 = vmatpush1.msra.mxu0 0.0
    %1192 = vmatprep.subr.mxu0 0.0
    %1193 = vmatpush1.msra.mxu0 0.0
    %1194 = vmatprep.subr.mxu0 0.0
    %1195 = vmatpush1.msra.mxu0 0.0
    %1196 = vmatprep.subr.mxu0 0.0
    %1197 = vmatpush1.msra.mxu0 0.0
    %1198 = vmatprep.subr.mxu0 0.0
    %1199 = vmatpush1.msra.mxu0 0.0
    %1200 = vmatprep.subr.mxu0 0.0
    %1201 = vmatpush1.msra.mxu0 0.0
    %1202 = vmatprep.mubr.f32.mxu0 0.0
    %1203 = vmatmul.mubr.f32.gmra.mrb[0].mxu0 %v1127
    %v1204 = vpop.f32.mrb[0].mxu0
    %v1205 = vadd.f32 %v1125, %v1204
    %v1206 = vpop.f32.mrb[0].mxu0
    %1207 = vmatprep.mubr.f32.mxu0 0.0
    %1208 = vmatmul.mubr.f32.gmra.mrb[0].mxu0 %v1130
    %v1209 = vpop.f32.mrb[0].mxu0
    %v1210 = vadd.f32 %v1125, %v1209
    %v1211 = vpop.f32.mrb[0].mxu0
    %1212 = vmatprep.mubr.f32.mxu0 0.0
    %1213 = vmatmul.mubr.f32.gmra.mrb[0].mxu0 %v1133
    %v1214 = vpop.f32.mrb[0].mxu0
    %v1215 = vadd.f32 %v1125, %v1214
    %v1216 = vpop.f32.mrb[0].mxu0
    %1217 = vmatprep.mubr.f32.mxu0 0.0
    %1218 = vmatmul.mubr.f32.gmra.mrb[0].mxu0 %v1136
    %v1219 = vpop.f32.mrb[0].mxu0
    %v1220 = vadd.f32 %v1125, %v1219
    %v1221 = vpop.f32.mrb[0].mxu0
    %1222 = vdwg.mxu0
    %v1223 = vmax.f32 %v1205, 0.0
    %v1224 = vmax.f32 %v1210, 0.0
    %v1225 = vmax.f32 %v1215, 0.0
    %v1226 = vmax.f32 %v1220, 0.0
    %1227 = vmatprep.subr.mxu0 0.0
    %1228 = vmatpush1.msra.mxu0 %v199
    %1229 = vmatprep.subr.mxu0 0.0
    %1230 = vmatpush1.msra.mxu0 %v200
    %1231 = vmatprep.subr.mxu0 0.0
    %1232 = vmatpush1.msra.mxu0 %v201
    %1233 = vmatprep.subr.mxu0 0.0
    %1234 = vmatpush1.msra.mxu0 %v202
    %1235 = vmatprep.subr.mxu0 0.0
    %1236 = vmatpush1.msra.mxu0 %v203
    %1237 = vmatprep.subr.mxu0 0.0
    %1238 = vmatpush1.msra.mxu0 %v204
    %1239 = vmatprep.subr.mxu0 0.0
    %1240 = vmatpush1.msra.mxu0 %v205
    %1241 = vmatprep.subr.mxu0 0.0
    %1242 = vmatpush1.msra.mxu0 %v206
    %1243 = vmatprep.subr.mxu0 0.0
    %1244 = vmatpush1.msra.mxu0 %v207
    %1245 = vmatprep.subr.mxu0 0.0
    %1246 = vmatpush1.msra.mxu0 %v208
    %1247 = vmatprep.subr.mxu0 0.0
    %1248 = vmatpush1.msra.mxu0 %v209
    %1249 = vmatprep.subr.mxu0 0.0
    %1250 = vmatpush1.msra.mxu0 %v210
    %1251 = vmatprep.subr.mxu0 0.0
    %1252 = vmatpush1.msra.mxu0 %v211
    %1253 = vmatprep.subr.mxu0 0.0
    %1254 = vmatpush1.msra.mxu0 %v212
    %1255 = vmatprep.subr.mxu0 0.0
    %1256 = vmatpush1.msra.mxu0 %v213
    %1257 = vmatprep.subr.mxu0 0.0
    %1258 = vmatpush1.msra.mxu0 %v214
    %1259 = vmatprep.subr.mxu0 0.0
    %1260 = vmatpush1.msra.mxu0 0.0
    %1261 = vmatprep.subr.mxu0 0.0
    %1262 = vmatpush1.msra.mxu0 0.0
    %1263 = vmatprep.subr.mxu0 0.0
    %1264 = vmatpush1.msra.mxu0 0.0
    %1265 = vmatprep.subr.mxu0 0.0
    %1266 = vmatpush1.msra.mxu0 0.0
    %1267 = vmatprep.subr.mxu0 0.0
    %1268 = vmatpush1.msra.mxu0 0.0
    %1269 = vmatprep.subr.mxu0 0.0
    %1270 = vmatpush1.msra.mxu0 0.0
    %1271 = vmatprep.subr.mxu0 0.0
    %1272 = vmatpush1.msra.mxu0 0.0
    %1273 = vmatprep.subr.mxu0 0.0
    %1274 = vmatpush1.msra.mxu0 0.0
    %1275 = vmatprep.subr.mxu0 0.0
    %1276 = vmatpush1.msra.mxu0 0.0
    %1277 = vmatprep.subr.mxu0 0.0
    %1278 = vmatpush1.msra.mxu0 0.0
    %1279 = vmatprep.subr.mxu0 0.0
    %1280 = vmatpush1.msra.mxu0 0.0
    %1281 = vmatprep.subr.mxu0 0.0
    %1282 = vmatpush1.msra.mxu0 0.0
    %1283 = vmatprep.subr.mxu0 0.0
    %1284 = vmatpush1.msra.mxu0 0.0
    %1285 = vmatprep.subr.mxu0 0.0
    %1286 = vmatpush1.msra.mxu0 0.0
    %1287 = vmatprep.subr.mxu0 0.0
    %1288 = vmatpush1.msra.mxu0 0.0
    %1289 = vmatprep.subr.mxu0 0.0
    %1290 = vmatpush1.msra.mxu0 0.0
    %1291 = vmatprep.mubr.f32.mxu0 0.0
    %1292 = vmatmul.mubr.f32.gmra.mrb[0].mxu0 %v1223
    %v1293 = vpop.f32.mrb[0].mxu0
    %v1294 = vadd.f32 0.0, %v1293
    %v1295 = vpop.f32.mrb[0].mxu0
    %1296 = vmatprep.mubr.f32.mxu0 0.0
    %1297 = vmatmul.mubr.f32.gmra.mrb[0].mxu0 %v1224
    %v1298 = vpop.f32.mrb[0].mxu0
    %v1299 = vadd.f32 0.0, %v1298
    %v1300 = vpop.f32.mrb[0].mxu0
    %1301 = vmatprep.mubr.f32.mxu0 0.0
    %1302 = vmatmul.mubr.f32.gmra.mrb[0].mxu0 %v1225
    %v1303 = vpop.f32.mrb[0].mxu0
    %v1304 = vadd.f32 0.0, %v1303
    %v1305 = vpop.f32.mrb[0].mxu0
    %1306 = vmatprep.mubr.f32.mxu0 0.0
    %1307 = vmatmul.mubr.f32.gmra.mrb[0].mxu0 %v1226
    %v1308 = vpop.f32.mrb[0].mxu0
    %v1309 = vadd.f32 0.0, %v1308
    %v1310 = vpop.f32.mrb[0].mxu0
    %1311 = vdwg.mxu0
    %v1312 = vadd.f32 %v1052, %v1294
    %v1313 = vadd.f32 %v1053, %v1299
    %v1314 = vadd.f32 %v1054, %v1304
    %v1315 = vadd.f32 %v1055, %v1309
    %1317 = vrot.lane.b32.xlu0 %v1051, 96
    %v1318 = vpop.permute.xlu0 %1317
    %v1320 = vadd.f32 %v1312, %v1318
    %v1321 = vadd.f32 %v1313, %v1318
    %v1322 = vadd.f32 %v1314, %v1318
    %v1323 = vadd.f32 %v1315, %v1318
    %s1324 = scalar_lea.vmem %s4, 32
    %v1325 = vld [vmem:[%s1324] sm:$0xff]
    %v1326 = vld [vmem:[%s1324 + $0x8] sm:$0xff]
    %v1327 = vld [vmem:[%s1324 + $0x10] sm:$0xff]
    %v1328 = vld [vmem:[%s1324 + $0x18] sm:$0xff]
    %s1329 = scalar_lea.vmem %s4, 96
    %v1330 = vld [vmem:[%s1329] sm:$0xff]
    %v1331 = vld [vmem:[%s1329 + $0x8] sm:$0xff]
    %v1332 = vld [vmem:[%s1329 + $0x10] sm:$0xff]
    %v1333 = vld [vmem:[%s1329 + $0x18] sm:$0xff]
    %s1334 = scalar_lea.vmem %s5, 256
    %v1335 = vld [vmem:[%s1334] sm:$0xff]
    %v1336 = vld [vmem:[%s1334 + $0x8] sm:$0xff]
    %v1337 = vld [vmem:[%s1334 + $0x10] sm:$0xff]
    %v1338 = vld [vmem:[%s1334 + $0x18] sm:$0xff]
    %v1339 = vld [vmem:[%s1334 + $0x20] sm:$0xff]
    %v1340 = vld [vmem:[%s1334 + $0x28] sm:$0xff]
    %v1341 = vld [vmem:[%s1334 + $0x30] sm:$0xff]
    %v1342 = vld [vmem:[%s1334 + $0x38] sm:$0xff]
    %v1343 = vld [vmem:[%s1334 + $0x40] sm:$0xff]
    %v1344 = vld [vmem:[%s1334 + $0x48] sm:$0xff]
    %v1345 = vld [vmem:[%s1334 + $0x50] sm:$0xff]
    %v1346 = vld [vmem:[%s1334 + $0x58] sm:$0xff]
    %v1347 = vld [vmem:[%s1334 + $0x60] sm:$0xff]
    %v1348 = vld [vmem:[%s1334 + $0x68] sm:$0xff]
    %v1349 = vld [vmem:[%s1334 + $0x70] sm:$0xff]
    %v1350 = vld [vmem:[%s1334 + $0x78] sm:$0xff]
    %v1351 = vsel %vm215, %v1320, 0.0
    %1352 = vadd.xlane.f32.xlu0 %v1351
    %v1353 = vpop.xlane.xlu0 %1352
    %v1354 = vsel %vm215, %v1321, 0.0
    %1355 = vadd.xlane.f32.xlu0 %v1354
    %v1356 = vpop.xlane.xlu0 %1355
    %v1357 = vsel %vm215, %v1322, 0.0
    %1358 = vadd.xlane.f32.xlu0 %v1357
    %v1359 = vpop.xlane.xlu0 %1358
    %v1360 = vsel %vm215, %v1323, 0.0
    %1361 = vadd.xlane.f32.xlu0 %v1360
    %v1362 = vpop.xlane.xlu0 %1361
    %v1363 = vmul.f32 %v1353, %v228
    %v1364 = vmul.f32 %v1356, %v228
    %v1365 = vmul.f32 %v1359, %v228
    %v1366 = vmul.f32 %v1362, %v228
    %v1367 = vsub.f32 %v1320, %v1363
    %v1368 = vsub.f32 %v1321, %v1364
    %v1369 = vsub.f32 %v1322, %v1365
    %v1370 = vsub.f32 %v1323, %v1366
    %v1371 = vmul.f32 %v1367, %v1367
    %v1372 = vmul.f32 %v1368, %v1368
    %v1373 = vmul.f32 %v1369, %v1369
    %v1374 = vmul.f32 %v1370, %v1370
    %v1375 = vsel %vm215, %v1371, 0.0
    %1376 = vadd.xlane.f32.xlu0 %v1375
    %v1377 = vpop.xlane.xlu0 %1376
    %v1378 = vsel %vm215, %v1372, 0.0
    %1379 = vadd.xlane.f32.xlu0 %v1378
    %v1380 = vpop.xlane.xlu0 %1379
    %v1381 = vsel %vm215, %v1373, 0.0
    %1382 = vadd.xlane.f32.xlu0 %v1381
    %v1383 = vpop.xlane.xlu0 %1382
    %v1384 = vsel %vm215, %v1374, 0.0
    %1385 = vadd.xlane.f32.xlu0 %v1384
    %v1386 = vpop.xlane.xlu0 %1385
    %v1387 = vmul.f32 %v1377, %v228
    %v1388 = vmul.f32 %v1380, %v228
    %v1389 = vmul.f32 %v1383, %v228
    %v1390 = vmul.f32 %v1386, %v228
    %v1391 = vadd.f32 %v1387, 1e-05
    %v1392 = vadd.f32 %v1388, 1e-05
    %v1393 = vadd.f32 %v1389, 1e-05
    %v1394 = vadd.f32 %v1390, 1e-05
    %v1395 = vrsqrt.pop %v1391
    %v1396 = vrsqrt.pop %v1392
    %v1397 = vrsqrt.pop %v1393
    %v1398 = vrsqrt.pop %v1394
    %v1399 = vmul.f32 %v1367, %v1395
    %v1400 = vmul.f32 %v1368, %v1396
    %v1401 = vmul.f32 %v1369, %v1397
    %v1402 = vmul.f32 %v1370, %v1398
    %v1403 = vlaneseq
    %v1404 = vshrl.u32 %v1403, 7
    %v1405 = vsub.s32 3, %v1404
    %v1406 = vrot.slane %v53, %v1405
    %v1407 = vmul.f32 %v1399, %v1406
    %v1408 = vmul.f32 %v1400, %v1406
    %v1409 = vmul.f32 %v1401, %v1406
    %v1410 = vmul.f32 %v1402, %v1406
    %1412 = vrot.lane.b32.xlu0 %v1406, 96
    %v1413 = vpop.permute.xlu0 %1412
    %v1415 = vadd.f32 %v1407, %v1413
    %v1416 = vadd.f32 %v1408, %v1413
    %v1417 = vadd.f32 %v1409, %v1413
    %v1418 = vadd.f32 %v1410, %v1413
    %v1420 = vsel %vm215, %v1415, 0
    %v1423 = vsel %vm215, %v1416, 0
    %v1426 = vsel %vm215, %v1417, 0
    %v1429 = vsel %vm215, %v1418, 0
    %1431 = vmatprep.subr.mxu0 0.0
    %1432 = vmatpush1.msra.mxu0 %v1325
    %1433 = vmatprep.subr.mxu0 0.0
    %1434 = vmatpush1.msra.mxu0 %v1326
    %1435 = vmatprep.subr.mxu0 0.0
    %1436 = vmatpush1.msra.mxu0 %v1327
    %1437 = vmatprep.subr.mxu0 0.0
    %1438 = vmatpush1.msra.mxu0 %v1328
    %1439 = vmatprep.subr.mxu0 0.0
    %1440 = vmatpush1.msra.mxu0 0.0
    %1441 = vmatprep.subr.mxu0 0.0
    %1442 = vmatpush1.msra.mxu0 0.0
    %1443 = vmatprep.subr.mxu0 0.0
    %1444 = vmatpush1.msra.mxu0 0.0
    %1445 = vmatprep.subr.mxu0 0.0
    %1446 = vmatpush1.msra.mxu0 0.0
    %1447 = vmatprep.subr.mxu0 0.0
    %1448 = vmatpush1.msra.mxu0 0.0
    %1449 = vmatprep.subr.mxu0 0.0
    %1450 = vmatpush1.msra.mxu0 0.0
    %1451 = vmatprep.subr.mxu0 0.0
    %1452 = vmatpush1.msra.mxu0 0.0
    %1453 = vmatprep.subr.mxu0 0.0
    %1454 = vmatpush1.msra.mxu0 0.0
    %1455 = vmatprep.subr.mxu0 0.0
    %1456 = vmatpush1.msra.mxu0 0.0
    %1457 = vmatprep.subr.mxu0 0.0
    %1458 = vmatpush1.msra.mxu0 0.0
    %1459 = vmatprep.subr.mxu0 0.0
    %1460 = vmatpush1.msra.mxu0 0.0
    %1461 = vmatprep.subr.mxu0 0.0
    %1462 = vmatpush1.msra.mxu0 0.0
    %1463 = vmatprep.subr.mxu0 0.0
    %1464 = vmatpush1.msra.mxu0 0.0
    %1465 = vmatprep.subr.mxu0 0.0
    %1466 = vmatpush1.msra.mxu0 0.0
    %1467 = vmatprep.subr.mxu0 0.0
    %1468 = vmatpush1.msra.mxu0 0.0
    %1469 = vmatprep.subr.mxu0 0.0
    %1470 = vmatpush1.msra.mxu0 0.0
    %1471 = vmatprep.subr.mxu0 0.0
    %1472 = vmatpush1.msra.mxu0 0.0
    %1473 = vmatprep.subr.mxu0 0.0
    %1474 = vmatpush1.msra.mxu0 0.0
    %1475 = vmatprep.subr.mxu0 0.0
    %1476 = vmatpush1.msra.mxu0 0.0
    %1477 = vmatprep.subr.mxu0 0.0
    %1478 = vmatpush1.msra.mxu0 0.0
    %1479 = vmatprep.subr.mxu0 0.0
    %1480 = vmatpush1.msra.mxu0 0.0
    %1481 = vmatprep.subr.mxu0 0.0
    %1482 = vmatpush1.msra.mxu0 0.0
    %1483 = vmatprep.subr.mxu0 0.0
    %1484 = vmatpush1.msra.mxu0 0.0
    %1485 = vmatprep.subr.mxu0 0.0
    %1486 = vmatpush1.msra.mxu0 0.0
    %1487 = vmatprep.subr.mxu0 0.0
    %1488 = vmatpush1.msra.mxu0 0.0
    %1489 = vmatprep.subr.mxu0 0.0
    %1490 = vmatpush1.msra.mxu0 0.0
    %1491 = vmatprep.subr.mxu0 0.0
    %1492 = vmatpush1.msra.mxu0 0.0
    %1493 = vmatprep.subr.mxu0 0.0
    %1494 = vmatpush1.msra.mxu0 0.0
    %1495 = vmatprep.mubr.f32.mxu0 0.0
    %1496 = vmatmul.mubr.f32.gmra.mrb[0].mxu0 %v1420
    %v1497 = vpop.f32.mrb[0].mxu0
    %v1498 = vadd.f32 0.0, %v1497
    %v1499 = vpop.f32.mrb[0].mxu0
    %1500 = vmatprep.mubr.f32.mxu0 0.0
    %1501 = vmatmul.mubr.f32.gmra.mrb[0].mxu0 %v1423
    %v1502 = vpop.f32.mrb[0].mxu0
    %v1503 = vadd.f32 0.0, %v1502
    %v1504 = vpop.f32.mrb[0].mxu0
    %1505 = vmatprep.mubr.f32.mxu0 0.0
    %1506 = vmatmul.mubr.f32.gmra.mrb[0].mxu0 %v1426
    %v1507 = vpop.f32.mrb[0].mxu0
    %v1508 = vadd.f32 0.0, %v1507
    %v1509 = vpop.f32.mrb[0].mxu0
    %1510 = vmatprep.mubr.f32.mxu0 0.0
    %1511 = vmatmul.mubr.f32.gmra.mrb[0].mxu0 %v1429
    %v1512 = vpop.f32.mrb[0].mxu0
    %v1513 = vadd.f32 0.0, %v1512
    %v1514 = vpop.f32.mrb[0].mxu0
    %1515 = vdwg.mxu0
    %1520 = vrot.lane.b32.xlu0 %v1498, 96
    %v1521 = vpop.permute.xlu0 %1520
    %1522 = vrot.lane.b32.xlu0 %v1503, 96
    %v1523 = vpop.permute.xlu0 %1522
    %1524 = vrot.lane.b32.xlu0 %v1508, 96
    %v1525 = vpop.permute.xlu0 %1524
    %1526 = vrot.lane.b32.xlu0 %v1513, 96
    %v1527 = vpop.permute.xlu0 %1526
    %1532 = vxpose.xlu0.b32.start [1/16] %v1521, 128
    %1533 = vxpose.xlu0.b32.cont [2/16] %v1523, 128
    %1534 = vxpose.xlu0.b32.cont [3/16] %v1525, 128
    %1535 = vxpose.xlu0.b32.cont [4/16] %v1527, 128
    %1536 = vxpose.xlu0.b32.cont [5/16] 0.0, 128
    %1537 = vxpose.xlu0.b32.cont [6/16] 0.0, 128
    %1538 = vxpose.xlu0.b32.cont [7/16] 0.0, 128
    %1539 = vxpose.xlu0.b32.cont [8/16] 0.0, 128
    %1540 = vxpose.xlu0.b32.cont [9/16] 0.0, 128
    %1541 = vxpose.xlu0.b32.cont [10/16] 0.0, 128
    %1542 = vxpose.xlu0.b32.cont [11/16] 0.0, 128
    %1543 = vxpose.xlu0.b32.cont [12/16] 0.0, 128
    %1544 = vxpose.xlu0.b32.cont [13/16] 0.0, 128
    %1545 = vxpose.xlu0.b32.cont [14/16] 0.0, 128
    %1546 = vxpose.xlu0.b32.cont [15/16] 0.0, 128
    %1547 = vxpose.xlu0.b32.end [16/16] 0.0, 128
    %v1548 = vpop.trf.xlu0
    %v1549 = vpop.trf.xlu0
    %v1550 = vpop.trf.xlu0
    %v1551 = vpop.trf.xlu0
    %v1552 = vpop.trf.xlu0
    %v1553 = vpop.trf.xlu0
    %v1554 = vpop.trf.xlu0
    %v1555 = vpop.trf.xlu0
    %v1556 = vpop.trf.xlu0
    %v1557 = vpop.trf.xlu0
    %v1558 = vpop.trf.xlu0
    %v1559 = vpop.trf.xlu0
    %v1560 = vpop.trf.xlu0
    %v1561 = vpop.trf.xlu0
    %v1562 = vpop.trf.xlu0
    %v1563 = vpop.trf.xlu0
    %1568 = vrot.lane.b32.xlu0 %v1548, 32
    %v1569 = vpop.permute.xlu0 %1568
    %1570 = vrot.lane.b32.xlu0 %v1549, 32
    %v1571 = vpop.permute.xlu0 %1570
    %1572 = vrot.lane.b32.xlu0 %v1550, 32
    %v1573 = vpop.permute.xlu0 %1572
    %1574 = vrot.lane.b32.xlu0 %v1551, 32
    %v1575 = vpop.permute.xlu0 %1574
    %1580 = vrot.lane.b32.xlu0 %v1548, 64
    %v1581 = vpop.permute.xlu0 %1580
    %1582 = vrot.lane.b32.xlu0 %v1549, 64
    %v1583 = vpop.permute.xlu0 %1582
    %1584 = vrot.lane.b32.xlu0 %v1550, 64
    %v1585 = vpop.permute.xlu0 %1584
    %1586 = vrot.lane.b32.xlu0 %v1551, 64
    %v1587 = vpop.permute.xlu0 %1586
    %1592 = vrot.lane.b32.xlu0 %v1548, 96
    %v1593 = vpop.permute.xlu0 %1592
    %1594 = vrot.lane.b32.xlu0 %v1549, 96
    %v1595 = vpop.permute.xlu0 %1594
    %1596 = vrot.lane.b32.xlu0 %v1550, 96
    %v1597 = vpop.permute.xlu0 %1596
    %1598 = vrot.lane.b32.xlu0 %v1551, 96
    %v1599 = vpop.permute.xlu0 %1598
    %v1604 = vsel %vm215, %v1548, %v1569
    %v1605 = vsel %vm215, %v1549, %v1571
    %v1606 = vsel %vm215, %v1550, %v1573
    %v1607 = vsel %vm215, %v1551, %v1575
    %v1608 = vsel %vm474, %v1604, %v1581
    %v1609 = vsel %vm474, %v1605, %v1583
    %v1610 = vsel %vm474, %v1606, %v1585
    %v1611 = vsel %vm474, %v1607, %v1587
    %v1612 = vsel %vm479, %v1608, %v1593
    %v1613 = vsel %vm479, %v1609, %v1595
    %v1614 = vsel %vm479, %v1610, %v1597
    %v1615 = vsel %vm479, %v1611, %v1599
    %v1616 = vmul.f32 %v1612, %v33
    %v1617 = vmul.f32 %v1613, %v34
    %v1618 = vmul.f32 %v1614, %v35
    %v1619 = vmul.f32 %v1615, %v36
    %v1620 = vsel %vm215, %v1498, 0
    %v1622 = vsel %vm215, %v1503, 0
    %v1624 = vsel %vm215, %v1508, 0
    %v1626 = vsel %vm215, %v1513, 0
    %1628 = vmatprep.subr.mxu0 0.0
    %1629 = vmatpush1.msra.mxu0 %v1616
    %1630 = vmatprep.subr.mxu0 0.0
    %1631 = vmatpush1.msra.mxu0 %v1617
    %1632 = vmatprep.subr.mxu0 0.0
    %1633 = vmatpush1.msra.mxu0 %v1618
    %1634 = vmatprep.subr.mxu0 0.0
    %1635 = vmatpush1.msra.mxu0 %v1619
    %1636 = vmatprep.subr.mxu0 0.0
    %1637 = vmatpush1.msra.mxu0 0.0
    %1638 = vmatprep.subr.mxu0 0.0
    %1639 = vmatpush1.msra.mxu0 0.0
    %1640 = vmatprep.subr.mxu0 0.0
    %1641 = vmatpush1.msra.mxu0 0.0
    %1642 = vmatprep.subr.mxu0 0.0
    %1643 = vmatpush1.msra.mxu0 0.0
    %1644 = vmatprep.subr.mxu0 0.0
    %1645 = vmatpush1.msra.mxu0 0.0
    %1646 = vmatprep.subr.mxu0 0.0
    %1647 = vmatpush1.msra.mxu0 0.0
    %1648 = vmatprep.subr.mxu0 0.0
    %1649 = vmatpush1.msra.mxu0 0.0
    %1650 = vmatprep.subr.mxu0 0.0
    %1651 = vmatpush1.msra.mxu0 0.0
    %1652 = vmatprep.subr.mxu0 0.0
    %1653 = vmatpush1.msra.mxu0 0.0
    %1654 = vmatprep.subr.mxu0 0.0
    %1655 = vmatpush1.msra.mxu0 0.0
    %1656 = vmatprep.subr.mxu0 0.0
    %1657 = vmatpush1.msra.mxu0 0.0
    %1658 = vmatprep.subr.mxu0 0.0
    %1659 = vmatpush1.msra.mxu0 0.0
    %1660 = vmatprep.subr.mxu0 0.0
    %1661 = vmatpush1.msra.mxu0 0.0
    %1662 = vmatprep.subr.mxu0 0.0
    %1663 = vmatpush1.msra.mxu0 0.0
    %1664 = vmatprep.subr.mxu0 0.0
    %1665 = vmatpush1.msra.mxu0 0.0
    %1666 = vmatprep.subr.mxu0 0.0
    %1667 = vmatpush1.msra.mxu0 0.0
    %1668 = vmatprep.subr.mxu0 0.0
    %1669 = vmatpush1.msra.mxu0 0.0
    %1670 = vmatprep.subr.mxu0 0.0
    %1671 = vmatpush1.msra.mxu0 0.0
    %1672 = vmatprep.subr.mxu0 0.0
    %1673 = vmatpush1.msra.mxu0 0.0
    %1674 = vmatprep.subr.mxu0 0.0
    %1675 = vmatpush1.msra.mxu0 0.0
    %1676 = vmatprep.subr.mxu0 0.0
    %1677 = vmatpush1.msra.mxu0 0.0
    %1678 = vmatprep.subr.mxu0 0.0
    %1679 = vmatpush1.msra.mxu0 0.0
    %1680 = vmatprep.subr.mxu0 0.0
    %1681 = vmatpush1.msra.mxu0 0.0
    %1682 = vmatprep.subr.mxu0 0.0
    %1683 = vmatpush1.msra.mxu0 0.0
    %1684 = vmatprep.subr.mxu0 0.0
    %1685 = vmatpush1.msra.mxu0 0.0
    %1686 = vmatprep.subr.mxu0 0.0
    %1687 = vmatpush1.msra.mxu0 0.0
    %1688 = vmatprep.subr.mxu0 0.0
    %1689 = vmatpush1.msra.mxu0 0.0
    %1690 = vmatprep.subr.mxu0 0.0
    %1691 = vmatpush1.msra.mxu0 0.0
    %1692 = vmatprep.mubr.f32.mxu0 0.0
    %1693 = vmatmul.mubr.f32.gmra.mrb[0].mxu0 %v1620
    %v1694 = vpop.f32.mrb[0].mxu0
    %v1695 = vadd.f32 0.0, %v1694
    %v1696 = vpop.f32.mrb[0].mxu0
    %1697 = vmatprep.mubr.f32.mxu0 0.0
    %1698 = vmatmul.mubr.f32.gmra.mrb[0].mxu0 %v1622
    %v1699 = vpop.f32.mrb[0].mxu0
    %v1700 = vadd.f32 0.0, %v1699
    %v1701 = vpop.f32.mrb[0].mxu0
    %1702 = vmatprep.mubr.f32.mxu0 0.0
    %1703 = vmatmul.mubr.f32.gmra.mrb[0].mxu0 %v1624
    %v1704 = vpop.f32.mrb[0].mxu0
    %v1705 = vadd.f32 0.0, %v1704
    %v1706 = vpop.f32.mrb[0].mxu0
    %1707 = vmatprep.mubr.f32.mxu0 0.0
    %1708 = vmatmul.mubr.f32.gmra.mrb[0].mxu0 %v1626
    %v1709 = vpop.f32.mrb[0].mxu0
    %v1710 = vadd.f32 0.0, %v1709
    %v1711 = vpop.f32.mrb[0].mxu0
    %1712 = vdwg.mxu0
    %v1713 = vmul.f32 %v1695, 0.17677669
    %v1714 = vmul.f32 %v1700, 0.17677669
    %v1715 = vmul.f32 %v1705, 0.17677669
    %v1716 = vmul.f32 %v1710, 0.17677669
    %v1717 = vadd.f32 %v1713, %v29
    %v1718 = vadd.f32 %v1714, %v30
    %v1719 = vadd.f32 %v1715, %v31
    %v1720 = vadd.f32 %v1716, %v32
    %1721 = vmax.xlane.f32.xlu0 %v1717
    %v1722 = vpop.xlane.xlu0 %1721
    %1723 = vmax.xlane.f32.xlu0 %v1718
    %v1724 = vpop.xlane.xlu0 %1723
    %1725 = vmax.xlane.f32.xlu0 %v1719
    %v1726 = vpop.xlane.xlu0 %1725
    %1727 = vmax.xlane.f32.xlu0 %v1720
    %v1728 = vpop.xlane.xlu0 %1727
    %v1729 = vsub.f32 %v1717, %v1722
    %v1730 = vsub.f32 %v1718, %v1724
    %v1731 = vsub.f32 %v1719, %v1726
    %v1732 = vsub.f32 %v1720, %v1728
    %v1733 = vmul.f32 %v1729, 1.442695
    %v1734 = vpow.pop %v1733
    %v1735 = vmul.f32 %v1730, 1.442695
    %v1736 = vpow.pop %v1735
    %v1737 = vmul.f32 %v1731, 1.442695
    %v1738 = vpow.pop %v1737
    %v1739 = vmul.f32 %v1732, 1.442695
    %v1740 = vpow.pop %v1739
    %v1741 = vmul.f32 %v1498, %v626
    %v1742 = vmul.f32 %v1503, %v628
    %v1743 = vmul.f32 %v1508, %v630
    %v1744 = vmul.f32 %v1513, %v632
    %v1745 = vmul.f32 %v1498, %v634
    %v1746 = vmul.f32 %v1503, %v636
    %v1747 = vmul.f32 %v1508, %v638
    %v1748 = vmul.f32 %v1513, %v640
    %v1749 = vmul.f32 %v1498, %v642
    %v1750 = vmul.f32 %v1503, %v644
    %v1751 = vmul.f32 %v1508, %v646
    %v1752 = vmul.f32 %v1513, %v648
    %v1753 = vmul.f32 %v1498, %v650
    %v1754 = vmul.f32 %v1503, %v652
    %v1755 = vmul.f32 %v1508, %v654
    %v1756 = vmul.f32 %v1513, %v656
    %1773 = vrot.lane.b32.xlu0 %v1741, 64
    %v1774 = vpop.permute.xlu0 %1773
    %1775 = vrot.lane.b32.xlu0 %v1742, 64
    %v1776 = vpop.permute.xlu0 %1775
    %1777 = vrot.lane.b32.xlu0 %v1743, 64
    %v1778 = vpop.permute.xlu0 %1777
    %1779 = vrot.lane.b32.xlu0 %v1744, 64
    %v1780 = vpop.permute.xlu0 %1779
    %1781 = vrot.lane.b32.xlu0 %v1745, 64
    %v1782 = vpop.permute.xlu0 %1781
    %1783 = vrot.lane.b32.xlu0 %v1746, 64
    %v1784 = vpop.permute.xlu0 %1783
    %1785 = vrot.lane.b32.xlu0 %v1747, 64
    %v1786 = vpop.permute.xlu0 %1785
    %1787 = vrot.lane.b32.xlu0 %v1748, 64
    %v1788 = vpop.permute.xlu0 %1787
    %1789 = vrot.lane.b32.xlu0 %v1749, 64
    %v1790 = vpop.permute.xlu0 %1789
    %1791 = vrot.lane.b32.xlu0 %v1750, 64
    %v1792 = vpop.permute.xlu0 %1791
    %1793 = vrot.lane.b32.xlu0 %v1751, 64
    %v1794 = vpop.permute.xlu0 %1793
    %1795 = vrot.lane.b32.xlu0 %v1752, 64
    %v1796 = vpop.permute.xlu0 %1795
    %1797 = vrot.lane.b32.xlu0 %v1753, 64
    %v1798 = vpop.permute.xlu0 %1797
    %1799 = vrot.lane.b32.xlu0 %v1754, 64
    %v1800 = vpop.permute.xlu0 %1799
    %1801 = vrot.lane.b32.xlu0 %v1755, 64
    %v1802 = vpop.permute.xlu0 %1801
    %1803 = vrot.lane.b32.xlu0 %v1756, 64
    %v1804 = vpop.permute.xlu0 %1803
    %1821 = vmatprep.subr.mxu0 0.0
    %1822 = vmatpush1.msra.mxu0 %v1774
    %1823 = vmatprep.subr.mxu0 0.0
    %1824 = vmatpush1.msra.mxu0 %v1776
    %1825 = vmatprep.subr.mxu0 0.0
    %1826 = vmatpush1.msra.mxu0 %v1778
    %1827 = vmatprep.subr.mxu0 0.0
    %1828 = vmatpush1.msra.mxu0 %v1780
    %1829 = vmatprep.subr.mxu0 0.0
    %1830 = vmatpush1.msra.mxu0 %v1782
    %1831 = vmatprep.subr.mxu0 0.0
    %1832 = vmatpush1.msra.mxu0 %v1784
    %1833 = vmatprep.subr.mxu0 0.0
    %1834 = vmatpush1.msra.mxu0 %v1786
    %1835 = vmatprep.subr.mxu0 0.0
    %1836 = vmatpush1.msra.mxu0 %v1788
    %1837 = vmatprep.subr.mxu0 0.0
    %1838 = vmatpush1.msra.mxu0 %v1790
    %1839 = vmatprep.subr.mxu0 0.0
    %1840 = vmatpush1.msra.mxu0 %v1792
    %1841 = vmatprep.subr.mxu0 0.0
    %1842 = vmatpush1.msra.mxu0 %v1794
    %1843 = vmatprep.subr.mxu0 0.0
    %1844 = vmatpush1.msra.mxu0 %v1796
    %1845 = vmatprep.subr.mxu0 0.0
    %1846 = vmatpush1.msra.mxu0 %v1798
    %1847 = vmatprep.subr.mxu0 0.0
    %1848 = vmatpush1.msra.mxu0 %v1800
    %1849 = vmatprep.subr.mxu0 0.0
    %1850 = vmatpush1.msra.mxu0 %v1802
    %1851 = vmatprep.subr.mxu0 0.0
    %1852 = vmatpush1.msra.mxu0 %v1804
    %1853 = vmatprep.subr.mxu0 0.0
    %1854 = vmatpush1.msra.mxu0 0.0
    %1855 = vmatprep.subr.mxu0 0.0
    %1856 = vmatpush1.msra.mxu0 0.0
    %1857 = vmatprep.subr.mxu0 0.0
    %1858 = vmatpush1.msra.mxu0 0.0
    %1859 = vmatprep.subr.mxu0 0.0
    %1860 = vmatpush1.msra.mxu0 0.0
    %1861 = vmatprep.subr.mxu0 0.0
    %1862 = vmatpush1.msra.mxu0 0.0
    %1863 = vmatprep.subr.mxu0 0.0
    %1864 = vmatpush1.msra.mxu0 0.0
    %1865 = vmatprep.subr.mxu0 0.0
    %1866 = vmatpush1.msra.mxu0 0.0
    %1867 = vmatprep.subr.mxu0 0.0
    %1868 = vmatpush1.msra.mxu0 0.0
    %1869 = vmatprep.subr.mxu0 0.0
    %1870 = vmatpush1.msra.mxu0 0.0
    %1871 = vmatprep.subr.mxu0 0.0
    %1872 = vmatpush1.msra.mxu0 0.0
    %1873 = vmatprep.subr.mxu0 0.0
    %1874 = vmatpush1.msra.mxu0 0.0
    %1875 = vmatprep.subr.mxu0 0.0
    %1876 = vmatpush1.msra.mxu0 0.0
    %1877 = vmatprep.subr.mxu0 0.0
    %1878 = vmatpush1.msra.mxu0 0.0
    %1879 = vmatprep.subr.mxu0 0.0
    %1880 = vmatpush1.msra.mxu0 0.0
    %1881 = vmatprep.subr.mxu0 0.0
    %1882 = vmatpush1.msra.mxu0 0.0
    %1883 = vmatprep.subr.mxu0 0.0
    %1884 = vmatpush1.msra.mxu0 0.0
    %1885 = vmatprep.mubr.f32.mxu0 0.0
    %1886 = vmatmul.mubr.f32.gmra.mrb[0].mxu0 %v1734
    %v1887 = vpop.f32.mrb[0].mxu0
    %v1888 = vadd.f32 0.0, %v1887
    %v1889 = vpop.f32.mrb[0].mxu0
    %1890 = vmatprep.mubr.f32.mxu0 0.0
    %1891 = vmatmul.mubr.f32.gmra.mrb[0].mxu0 %v1736
    %v1892 = vpop.f32.mrb[0].mxu0
    %v1893 = vadd.f32 0.0, %v1892
    %v1894 = vpop.f32.mrb[0].mxu0
    %1895 = vmatprep.mubr.f32.mxu0 0.0
    %1896 = vmatmul.mubr.f32.gmra.mrb[0].mxu0 %v1738
    %v1897 = vpop.f32.mrb[0].mxu0
    %v1898 = vadd.f32 0.0, %v1897
    %v1899 = vpop.f32.mrb[0].mxu0
    %1900 = vmatprep.mubr.f32.mxu0 0.0
    %1901 = vmatmul.mubr.f32.gmra.mrb[0].mxu0 %v1740
    %v1902 = vpop.f32.mrb[0].mxu0
    %v1903 = vadd.f32 0.0, %v1902
    %v1904 = vpop.f32.mrb[0].mxu0
    %1905 = vdwg.mxu0
    %1906 = vmatprep.subr.mxu0 0.0
    %1907 = vmatpush1.msra.mxu0 %v37
    %1908 = vmatprep.subr.mxu0 0.0
    %1909 = vmatpush1.msra.mxu0 %v38
    %1910 = vmatprep.subr.mxu0 0.0
    %1911 = vmatpush1.msra.mxu0 %v39
    %1912 = vmatprep.subr.mxu0 0.0
    %1913 = vmatpush1.msra.mxu0 %v40
    %1914 = vmatprep.subr.mxu0 0.0
    %1915 = vmatpush1.msra.mxu0 %v41
    %1916 = vmatprep.subr.mxu0 0.0
    %1917 = vmatpush1.msra.mxu0 %v42
    %1918 = vmatprep.subr.mxu0 0.0
    %1919 = vmatpush1.msra.mxu0 %v43
    %1920 = vmatprep.subr.mxu0 0.0
    %1921 = vmatpush1.msra.mxu0 %v44
    %1922 = vmatprep.subr.mxu0 0.0
    %1923 = vmatpush1.msra.mxu0 %v45
    %1924 = vmatprep.subr.mxu0 0.0
    %1925 = vmatpush1.msra.mxu0 %v46
    %1926 = vmatprep.subr.mxu0 0.0
    %1927 = vmatpush1.msra.mxu0 %v47
    %1928 = vmatprep.subr.mxu0 0.0
    %1929 = vmatpush1.msra.mxu0 %v48
    %1930 = vmatprep.subr.mxu0 0.0
    %1931 = vmatpush1.msra.mxu0 %v49
    %1932 = vmatprep.subr.mxu0 0.0
    %1933 = vmatpush1.msra.mxu0 %v50
    %1934 = vmatprep.subr.mxu0 0.0
    %1935 = vmatpush1.msra.mxu0 %v51
    %1936 = vmatprep.subr.mxu0 0.0
    %1937 = vmatpush1.msra.mxu0 %v52
    %1938 = vmatprep.subr.mxu0 0.0
    %1939 = vmatpush1.msra.mxu0 0.0
    %1940 = vmatprep.subr.mxu0 0.0
    %1941 = vmatpush1.msra.mxu0 0.0
    %1942 = vmatprep.subr.mxu0 0.0
    %1943 = vmatpush1.msra.mxu0 0.0
    %1944 = vmatprep.subr.mxu0 0.0
    %1945 = vmatpush1.msra.mxu0 0.0
    %1946 = vmatprep.subr.mxu0 0.0
    %1947 = vmatpush1.msra.mxu0 0.0
    %1948 = vmatprep.subr.mxu0 0.0
    %1949 = vmatpush1.msra.mxu0 0.0
    %1950 = vmatprep.subr.mxu0 0.0
    %1951 = vmatpush1.msra.mxu0 0.0
    %1952 = vmatprep.subr.mxu0 0.0
    %1953 = vmatpush1.msra.mxu0 0.0
    %1954 = vmatprep.subr.mxu0 0.0
    %1955 = vmatpush1.msra.mxu0 0.0
    %1956 = vmatprep.subr.mxu0 0.0
    %1957 = vmatpush1.msra.mxu0 0.0
    %1958 = vmatprep.subr.mxu0 0.0
    %1959 = vmatpush1.msra.mxu0 0.0
    %1960 = vmatprep.subr.mxu0 0.0
    %1961 = vmatpush1.msra.mxu0 0.0
    %1962 = vmatprep.subr.mxu0 0.0
    %1963 = vmatpush1.msra.mxu0 0.0
    %1964 = vmatprep.subr.mxu0 0.0
    %1965 = vmatpush1.msra.mxu0 0.0
    %1966 = vmatprep.subr.mxu0 0.0
    %1967 = vmatpush1.msra.mxu0 0.0
    %1968 = vmatprep.subr.mxu0 0.0
    %1969 = vmatpush1.msra.mxu0 0.0
    %1970 = vmatprep.mubr.f32.mxu0 0.0
    %1971 = vmatmul.mubr.f32.gmra.mrb[0].mxu0 %v1734
    %v1972 = vpop.f32.mrb[0].mxu0
    %v1973 = vadd.f32 0.0, %v1972
    %v1974 = vpop.f32.mrb[0].mxu0
    %1975 = vmatprep.mubr.f32.mxu0 0.0
    %1976 = vmatmul.mubr.f32.gmra.mrb[0].mxu0 %v1736
    %v1977 = vpop.f32.mrb[0].mxu0
    %v1978 = vadd.f32 0.0, %v1977
    %v1979 = vpop.f32.mrb[0].mxu0
    %1980 = vmatprep.mubr.f32.mxu0 0.0
    %1981 = vmatmul.mubr.f32.gmra.mrb[0].mxu0 %v1738
    %v1982 = vpop.f32.mrb[0].mxu0
    %v1983 = vadd.f32 0.0, %v1982
    %v1984 = vpop.f32.mrb[0].mxu0
    %1985 = vmatprep.mubr.f32.mxu0 0.0
    %1986 = vmatmul.mubr.f32.gmra.mrb[0].mxu0 %v1740
    %v1987 = vpop.f32.mrb[0].mxu0
    %v1988 = vadd.f32 0.0, %v1987
    %v1989 = vpop.f32.mrb[0].mxu0
    %1990 = vdwg.mxu0
    %v1991 = vrcp.pop %v1973
    %v1992 = vrcp.pop %v1978
    %v1993 = vrcp.pop %v1983
    %v1994 = vrcp.pop %v1988
    %v1995 = vmul.f32 %v1888, %v1991
    %v1996 = vmul.f32 %v1893, %v1992
    %v1997 = vmul.f32 %v1898, %v1993
    %v1998 = vmul.f32 %v1903, %v1994
    %2003 = vrot.lane.b32.xlu0 %v1325, 32
    %v2004 = vpop.permute.xlu0 %2003
    %2005 = vrot.lane.b32.xlu0 %v1326, 32
    %v2006 = vpop.permute.xlu0 %2005
    %2007 = vrot.lane.b32.xlu0 %v1327, 32
    %v2008 = vpop.permute.xlu0 %2007
    %2009 = vrot.lane.b32.xlu0 %v1328, 32
    %v2010 = vpop.permute.xlu0 %2009
    %v2016 = vsel %vm215, %v1995, 0
    %v2019 = vsel %vm215, %v1996, 0
    %v2022 = vsel %vm215, %v1997, 0
    %v2025 = vsel %vm215, %v1998, 0
    %2027 = vmatprep.subr.mxu0 0.0
    %2028 = vmatpush1.msra.mxu0 %v2004
    %2029 = vmatprep.subr.mxu0 0.0
    %2030 = vmatpush1.msra.mxu0 %v2006
    %2031 = vmatprep.subr.mxu0 0.0
    %2032 = vmatpush1.msra.mxu0 %v2008
    %2033 = vmatprep.subr.mxu0 0.0
    %2034 = vmatpush1.msra.mxu0 %v2010
    %2035 = vmatprep.subr.mxu0 0.0
    %2036 = vmatpush1.msra.mxu0 0.0
    %2037 = vmatprep.subr.mxu0 0.0
    %2038 = vmatpush1.msra.mxu0 0.0
    %2039 = vmatprep.subr.mxu0 0.0
    %2040 = vmatpush1.msra.mxu0 0.0
    %2041 = vmatprep.subr.mxu0 0.0
    %2042 = vmatpush1.msra.mxu0 0.0
    %2043 = vmatprep.subr.mxu0 0.0
    %2044 = vmatpush1.msra.mxu0 0.0
    %2045 = vmatprep.subr.mxu0 0.0
    %2046 = vmatpush1.msra.mxu0 0.0
    %2047 = vmatprep.subr.mxu0 0.0
    %2048 = vmatpush1.msra.mxu0 0.0
    %2049 = vmatprep.subr.mxu0 0.0
    %2050 = vmatpush1.msra.mxu0 0.0
    %2051 = vmatprep.subr.mxu0 0.0
    %2052 = vmatpush1.msra.mxu0 0.0
    %2053 = vmatprep.subr.mxu0 0.0
    %2054 = vmatpush1.msra.mxu0 0.0
    %2055 = vmatprep.subr.mxu0 0.0
    %2056 = vmatpush1.msra.mxu0 0.0
    %2057 = vmatprep.subr.mxu0 0.0
    %2058 = vmatpush1.msra.mxu0 0.0
    %2059 = vmatprep.subr.mxu0 0.0
    %2060 = vmatpush1.msra.mxu0 0.0
    %2061 = vmatprep.subr.mxu0 0.0
    %2062 = vmatpush1.msra.mxu0 0.0
    %2063 = vmatprep.subr.mxu0 0.0
    %2064 = vmatpush1.msra.mxu0 0.0
    %2065 = vmatprep.subr.mxu0 0.0
    %2066 = vmatpush1.msra.mxu0 0.0
    %2067 = vmatprep.subr.mxu0 0.0
    %2068 = vmatpush1.msra.mxu0 0.0
    %2069 = vmatprep.subr.mxu0 0.0
    %2070 = vmatpush1.msra.mxu0 0.0
    %2071 = vmatprep.subr.mxu0 0.0
    %2072 = vmatpush1.msra.mxu0 0.0
    %2073 = vmatprep.subr.mxu0 0.0
    %2074 = vmatpush1.msra.mxu0 0.0
    %2075 = vmatprep.subr.mxu0 0.0
    %2076 = vmatpush1.msra.mxu0 0.0
    %2077 = vmatprep.subr.mxu0 0.0
    %2078 = vmatpush1.msra.mxu0 0.0
    %2079 = vmatprep.subr.mxu0 0.0
    %2080 = vmatpush1.msra.mxu0 0.0
    %2081 = vmatprep.subr.mxu0 0.0
    %2082 = vmatpush1.msra.mxu0 0.0
    %2083 = vmatprep.subr.mxu0 0.0
    %2084 = vmatpush1.msra.mxu0 0.0
    %2085 = vmatprep.subr.mxu0 0.0
    %2086 = vmatpush1.msra.mxu0 0.0
    %2087 = vmatprep.subr.mxu0 0.0
    %2088 = vmatpush1.msra.mxu0 0.0
    %2089 = vmatprep.subr.mxu0 0.0
    %2090 = vmatpush1.msra.mxu0 0.0
    %2091 = vmatprep.mubr.f32.mxu0 0.0
    %2092 = vmatmul.mubr.f32.gmra.mrb[0].mxu0 %v2016
    %v2093 = vpop.f32.mrb[0].mxu0
    %v2094 = vadd.f32 0.0, %v2093
    %v2095 = vpop.f32.mrb[0].mxu0
    %2096 = vmatprep.mubr.f32.mxu0 0.0
    %2097 = vmatmul.mubr.f32.gmra.mrb[0].mxu0 %v2019
    %v2098 = vpop.f32.mrb[0].mxu0
    %v2099 = vadd.f32 0.0, %v2098
    %v2100 = vpop.f32.mrb[0].mxu0
    %2101 = vmatprep.mubr.f32.mxu0 0.0
    %2102 = vmatmul.mubr.f32.gmra.mrb[0].mxu0 %v2022
    %v2103 = vpop.f32.mrb[0].mxu0
    %v2104 = vadd.f32 0.0, %v2103
    %v2105 = vpop.f32.mrb[0].mxu0
    %2106 = vmatprep.mubr.f32.mxu0 0.0
    %2107 = vmatmul.mubr.f32.gmra.mrb[0].mxu0 %v2025
    %v2108 = vpop.f32.mrb[0].mxu0
    %v2109 = vadd.f32 0.0, %v2108
    %v2110 = vpop.f32.mrb[0].mxu0
    %2111 = vdwg.mxu0
    %v2112 = vadd.f32 %v1320, %v2094
    %v2113 = vadd.f32 %v1321, %v2099
    %v2114 = vadd.f32 %v1322, %v2104
    %v2115 = vadd.f32 %v1323, %v2109
    %v2116 = vlaneseq
    %v2117 = vshrl.u32 %v2116, 7
    %v2118 = vsub.s32 4, %v2117
    %v2119 = vrot.slane %v53, %v2118
    %v2120 = vadd.f32 %v2112, %v2119
    %v2121 = vadd.f32 %v2113, %v2119
    %v2122 = vadd.f32 %v2114, %v2119
    %v2123 = vadd.f32 %v2115, %v2119
    %v2124 = vsel %vm215, %v2120, 0.0
    %2125 = vadd.xlane.f32.xlu0 %v2124
    %v2126 = vpop.xlane.xlu0 %2125
    %v2127 = vsel %vm215, %v2121, 0.0
    %2128 = vadd.xlane.f32.xlu0 %v2127
    %v2129 = vpop.xlane.xlu0 %2128
    %v2130 = vsel %vm215, %v2122, 0.0
    %2131 = vadd.xlane.f32.xlu0 %v2130
    %v2132 = vpop.xlane.xlu0 %2131
    %v2133 = vsel %vm215, %v2123, 0.0
    %2134 = vadd.xlane.f32.xlu0 %v2133
    %v2135 = vpop.xlane.xlu0 %2134
    %v2136 = vmul.f32 %v2126, %v228
    %v2137 = vmul.f32 %v2129, %v228
    %v2138 = vmul.f32 %v2132, %v228
    %v2139 = vmul.f32 %v2135, %v228
    %v2140 = vsub.f32 %v2120, %v2136
    %v2141 = vsub.f32 %v2121, %v2137
    %v2142 = vsub.f32 %v2122, %v2138
    %v2143 = vsub.f32 %v2123, %v2139
    %v2144 = vmul.f32 %v2140, %v2140
    %v2145 = vmul.f32 %v2141, %v2141
    %v2146 = vmul.f32 %v2142, %v2142
    %v2147 = vmul.f32 %v2143, %v2143
    %v2148 = vsel %vm215, %v2144, 0.0
    %2149 = vadd.xlane.f32.xlu0 %v2148
    %v2150 = vpop.xlane.xlu0 %2149
    %v2151 = vsel %vm215, %v2145, 0.0
    %2152 = vadd.xlane.f32.xlu0 %v2151
    %v2153 = vpop.xlane.xlu0 %2152
    %v2154 = vsel %vm215, %v2146, 0.0
    %2155 = vadd.xlane.f32.xlu0 %v2154
    %v2156 = vpop.xlane.xlu0 %2155
    %v2157 = vsel %vm215, %v2147, 0.0
    %2158 = vadd.xlane.f32.xlu0 %v2157
    %v2159 = vpop.xlane.xlu0 %2158
    %v2160 = vmul.f32 %v2150, %v228
    %v2161 = vmul.f32 %v2153, %v228
    %v2162 = vmul.f32 %v2156, %v228
    %v2163 = vmul.f32 %v2159, %v228
    %v2164 = vadd.f32 %v2160, 1e-05
    %v2165 = vadd.f32 %v2161, 1e-05
    %v2166 = vadd.f32 %v2162, 1e-05
    %v2167 = vadd.f32 %v2163, 1e-05
    %v2168 = vrsqrt.pop %v2164
    %v2169 = vrsqrt.pop %v2165
    %v2170 = vrsqrt.pop %v2166
    %v2171 = vrsqrt.pop %v2167
    %v2172 = vmul.f32 %v2140, %v2168
    %v2173 = vmul.f32 %v2141, %v2169
    %v2174 = vmul.f32 %v2142, %v2170
    %v2175 = vmul.f32 %v2143, %v2171
    %2176 = vrot.lane.b32.xlu0 %v1406, 64
    %v2177 = vpop.permute.xlu0 %2176
    %v2179 = vmul.f32 %v2172, %v2177
    %v2180 = vmul.f32 %v2173, %v2177
    %v2181 = vmul.f32 %v2174, %v2177
    %v2182 = vmul.f32 %v2175, %v2177
    %2183 = vrot.lane.b32.xlu0 %v1406, 32
    %v2184 = vpop.permute.xlu0 %2183
    %v2186 = vadd.f32 %v2179, %v2184
    %v2187 = vadd.f32 %v2180, %v2184
    %v2188 = vadd.f32 %v2181, %v2184
    %v2189 = vadd.f32 %v2182, %v2184
    %v2190 = vlaneseq
    %v2191 = vshrl.u32 %v2190, 7
    %v2192 = vsub.s32 5, %v2191
    %v2193 = vrot.slane %v53, %v2192
    %v2195 = vsel %vm215, %v2186, 0
    %v2198 = vsel %vm215, %v2187, 0
    %v2201 = vsel %vm215, %v2188, 0
    %v2204 = vsel %vm215, %v2189, 0
    %2206 = vmatprep.subr.mxu0 0.0
    %2207 = vmatpush1.msra.mxu0 %v1330
    %2208 = vmatprep.subr.mxu0 0.0
    %2209 = vmatpush1.msra.mxu0 %v1331
    %2210 = vmatprep.subr.mxu0 0.0
    %2211 = vmatpush1.msra.mxu0 %v1332
    %2212 = vmatprep.subr.mxu0 0.0
    %2213 = vmatpush1.msra.mxu0 %v1333
    %2214 = vmatprep.subr.mxu0 0.0
    %2215 = vmatpush1.msra.mxu0 0.0
    %2216 = vmatprep.subr.mxu0 0.0
    %2217 = vmatpush1.msra.mxu0 0.0
    %2218 = vmatprep.subr.mxu0 0.0
    %2219 = vmatpush1.msra.mxu0 0.0
    %2220 = vmatprep.subr.mxu0 0.0
    %2221 = vmatpush1.msra.mxu0 0.0
    %2222 = vmatprep.subr.mxu0 0.0
    %2223 = vmatpush1.msra.mxu0 0.0
    %2224 = vmatprep.subr.mxu0 0.0
    %2225 = vmatpush1.msra.mxu0 0.0
    %2226 = vmatprep.subr.mxu0 0.0
    %2227 = vmatpush1.msra.mxu0 0.0
    %2228 = vmatprep.subr.mxu0 0.0
    %2229 = vmatpush1.msra.mxu0 0.0
    %2230 = vmatprep.subr.mxu0 0.0
    %2231 = vmatpush1.msra.mxu0 0.0
    %2232 = vmatprep.subr.mxu0 0.0
    %2233 = vmatpush1.msra.mxu0 0.0
    %2234 = vmatprep.subr.mxu0 0.0
    %2235 = vmatpush1.msra.mxu0 0.0
    %2236 = vmatprep.subr.mxu0 0.0
    %2237 = vmatpush1.msra.mxu0 0.0
    %2238 = vmatprep.subr.mxu0 0.0
    %2239 = vmatpush1.msra.mxu0 0.0
    %2240 = vmatprep.subr.mxu0 0.0
    %2241 = vmatpush1.msra.mxu0 0.0
    %2242 = vmatprep.subr.mxu0 0.0
    %2243 = vmatpush1.msra.mxu0 0.0
    %2244 = vmatprep.subr.mxu0 0.0
    %2245 = vmatpush1.msra.mxu0 0.0
    %2246 = vmatprep.subr.mxu0 0.0
    %2247 = vmatpush1.msra.mxu0 0.0
    %2248 = vmatprep.subr.mxu0 0.0
    %2249 = vmatpush1.msra.mxu0 0.0
    %2250 = vmatprep.subr.mxu0 0.0
    %2251 = vmatpush1.msra.mxu0 0.0
    %2252 = vmatprep.subr.mxu0 0.0
    %2253 = vmatpush1.msra.mxu0 0.0
    %2254 = vmatprep.subr.mxu0 0.0
    %2255 = vmatpush1.msra.mxu0 0.0
    %2256 = vmatprep.subr.mxu0 0.0
    %2257 = vmatpush1.msra.mxu0 0.0
    %2258 = vmatprep.subr.mxu0 0.0
    %2259 = vmatpush1.msra.mxu0 0.0
    %2260 = vmatprep.subr.mxu0 0.0
    %2261 = vmatpush1.msra.mxu0 0.0
    %2262 = vmatprep.subr.mxu0 0.0
    %2263 = vmatpush1.msra.mxu0 0.0
    %2264 = vmatprep.subr.mxu0 0.0
    %2265 = vmatpush1.msra.mxu0 0.0
    %2266 = vmatprep.subr.mxu0 0.0
    %2267 = vmatpush1.msra.mxu0 0.0
    %2268 = vmatprep.subr.mxu0 0.0
    %2269 = vmatpush1.msra.mxu0 0.0
    %2270 = vmatprep.mubr.f32.mxu0 0.0
    %2271 = vmatmul.mubr.f32.gmra.mrb[0].mxu0 %v2195
    %v2272 = vpop.f32.mrb[0].mxu0
    %v2273 = vadd.f32 %v2193, %v2272
    %v2274 = vpop.f32.mrb[0].mxu0
    %2275 = vmatprep.mubr.f32.mxu0 0.0
    %2276 = vmatmul.mubr.f32.gmra.mrb[0].mxu0 %v2198
    %v2277 = vpop.f32.mrb[0].mxu0
    %v2278 = vadd.f32 %v2193, %v2277
    %v2279 = vpop.f32.mrb[0].mxu0
    %2280 = vmatprep.mubr.f32.mxu0 0.0
    %2281 = vmatmul.mubr.f32.gmra.mrb[0].mxu0 %v2201
    %v2282 = vpop.f32.mrb[0].mxu0
    %v2283 = vadd.f32 %v2193, %v2282
    %v2284 = vpop.f32.mrb[0].mxu0
    %2285 = vmatprep.mubr.f32.mxu0 0.0
    %2286 = vmatmul.mubr.f32.gmra.mrb[0].mxu0 %v2204
    %v2287 = vpop.f32.mrb[0].mxu0
    %v2288 = vadd.f32 %v2193, %v2287
    %v2289 = vpop.f32.mrb[0].mxu0
    %2290 = vdwg.mxu0
    %v2291 = vmax.f32 %v2273, 0.0
    %v2292 = vmax.f32 %v2278, 0.0
    %v2293 = vmax.f32 %v2283, 0.0
    %v2294 = vmax.f32 %v2288, 0.0
    %2295 = vmatprep.subr.mxu0 0.0
    %2296 = vmatpush1.msra.mxu0 %v1335
    %2297 = vmatprep.subr.mxu0 0.0
    %2298 = vmatpush1.msra.mxu0 %v1336
    %2299 = vmatprep.subr.mxu0 0.0
    %2300 = vmatpush1.msra.mxu0 %v1337
    %2301 = vmatprep.subr.mxu0 0.0
    %2302 = vmatpush1.msra.mxu0 %v1338
    %2303 = vmatprep.subr.mxu0 0.0
    %2304 = vmatpush1.msra.mxu0 %v1339
    %2305 = vmatprep.subr.mxu0 0.0
    %2306 = vmatpush1.msra.mxu0 %v1340
    %2307 = vmatprep.subr.mxu0 0.0
    %2308 = vmatpush1.msra.mxu0 %v1341
    %2309 = vmatprep.subr.mxu0 0.0
    %2310 = vmatpush1.msra.mxu0 %v1342
    %2311 = vmatprep.subr.mxu0 0.0
    %2312 = vmatpush1.msra.mxu0 %v1343
    %2313 = vmatprep.subr.mxu0 0.0
    %2314 = vmatpush1.msra.mxu0 %v1344
    %2315 = vmatprep.subr.mxu0 0.0
    %2316 = vmatpush1.msra.mxu0 %v1345
    %2317 = vmatprep.subr.mxu0 0.0
    %2318 = vmatpush1.msra.mxu0 %v1346
    %2319 = vmatprep.subr.mxu0 0.0
    %2320 = vmatpush1.msra.mxu0 %v1347
    %2321 = vmatprep.subr.mxu0 0.0
    %2322 = vmatpush1.msra.mxu0 %v1348
    %2323 = vmatprep.subr.mxu0 0.0
    %2324 = vmatpush1.msra.mxu0 %v1349
    %2325 = vmatprep.subr.mxu0 0.0
    %2326 = vmatpush1.msra.mxu0 %v1350
    %2327 = vmatprep.subr.mxu0 0.0
    %2328 = vmatpush1.msra.mxu0 0.0
    %2329 = vmatprep.subr.mxu0 0.0
    %2330 = vmatpush1.msra.mxu0 0.0
    %2331 = vmatprep.subr.mxu0 0.0
    %2332 = vmatpush1.msra.mxu0 0.0
    %2333 = vmatprep.subr.mxu0 0.0
    %2334 = vmatpush1.msra.mxu0 0.0
    %2335 = vmatprep.subr.mxu0 0.0
    %2336 = vmatpush1.msra.mxu0 0.0
    %2337 = vmatprep.subr.mxu0 0.0
    %2338 = vmatpush1.msra.mxu0 0.0
    %2339 = vmatprep.subr.mxu0 0.0
    %2340 = vmatpush1.msra.mxu0 0.0
    %2341 = vmatprep.subr.mxu0 0.0
    %2342 = vmatpush1.msra.mxu0 0.0
    %2343 = vmatprep.subr.mxu0 0.0
    %2344 = vmatpush1.msra.mxu0 0.0
    %2345 = vmatprep.subr.mxu0 0.0
    %2346 = vmatpush1.msra.mxu0 0.0
    %2347 = vmatprep.subr.mxu0 0.0
    %2348 = vmatpush1.msra.mxu0 0.0
    %2349 = vmatprep.subr.mxu0 0.0
    %2350 = vmatpush1.msra.mxu0 0.0
    %2351 = vmatprep.subr.mxu0 0.0
    %2352 = vmatpush1.msra.mxu0 0.0
    %2353 = vmatprep.subr.mxu0 0.0
    %2354 = vmatpush1.msra.mxu0 0.0
    %2355 = vmatprep.subr.mxu0 0.0
    %2356 = vmatpush1.msra.mxu0 0.0
    %2357 = vmatprep.subr.mxu0 0.0
    %2358 = vmatpush1.msra.mxu0 0.0
    %2359 = vmatprep.mubr.f32.mxu0 0.0
    %2360 = vmatmul.mubr.f32.gmra.mrb[0].mxu0 %v2291
    %v2361 = vpop.f32.mrb[0].mxu0
    %v2362 = vadd.f32 0.0, %v2361
    %v2363 = vpop.f32.mrb[0].mxu0
    %2364 = vmatprep.mubr.f32.mxu0 0.0
    %2365 = vmatmul.mubr.f32.gmra.mrb[0].mxu0 %v2292
    %v2366 = vpop.f32.mrb[0].mxu0
    %v2367 = vadd.f32 0.0, %v2366
    %v2368 = vpop.f32.mrb[0].mxu0
    %2369 = vmatprep.mubr.f32.mxu0 0.0
    %2370 = vmatmul.mubr.f32.gmra.mrb[0].mxu0 %v2293
    %v2371 = vpop.f32.mrb[0].mxu0
    %v2372 = vadd.f32 0.0, %v2371
    %v2373 = vpop.f32.mrb[0].mxu0
    %2374 = vmatprep.mubr.f32.mxu0 0.0
    %2375 = vmatmul.mubr.f32.gmra.mrb[0].mxu0 %v2294
    %v2376 = vpop.f32.mrb[0].mxu0
    %v2377 = vadd.f32 0.0, %v2376
    %v2378 = vpop.f32.mrb[0].mxu0
    %2379 = vdwg.mxu0
    %v2380 = vadd.f32 %v2120, %v2362
    %v2381 = vadd.f32 %v2121, %v2367
    %v2382 = vadd.f32 %v2122, %v2372
    %v2383 = vadd.f32 %v2123, %v2377
    %2385 = vrot.lane.b32.xlu0 %v2119, 96
    %v2386 = vpop.permute.xlu0 %2385
    %v2388 = vadd.f32 %v2380, %v2386
    %v2389 = vadd.f32 %v2381, %v2386
    %v2390 = vadd.f32 %v2382, %v2386
    %v2391 = vadd.f32 %v2383, %v2386
    %v2392 = vsel %vm215, %v2388, 0.0
    %2393 = vadd.xlane.f32.xlu0 %v2392
    %v2394 = vpop.xlane.xlu0 %2393
    %v2395 = vsel %vm215, %v2389, 0.0
    %2396 = vadd.xlane.f32.xlu0 %v2395
    %v2397 = vpop.xlane.xlu0 %2396
    %v2398 = vsel %vm215, %v2390, 0.0
    %2399 = vadd.xlane.f32.xlu0 %v2398
    %v2400 = vpop.xlane.xlu0 %2399
    %v2401 = vsel %vm215, %v2391, 0.0
    %2402 = vadd.xlane.f32.xlu0 %v2401
    %v2403 = vpop.xlane.xlu0 %2402
    %v2404 = vmul.f32 %v2394, %v228
    %v2405 = vmul.f32 %v2397, %v228
    %v2406 = vmul.f32 %v2400, %v228
    %v2407 = vmul.f32 %v2403, %v228
    %v2408 = vsub.f32 %v2388, %v2404
    %v2409 = vsub.f32 %v2389, %v2405
    %v2410 = vsub.f32 %v2390, %v2406
    %v2411 = vsub.f32 %v2391, %v2407
    %v2412 = vmul.f32 %v2408, %v2408
    %v2413 = vmul.f32 %v2409, %v2409
    %v2414 = vmul.f32 %v2410, %v2410
    %v2415 = vmul.f32 %v2411, %v2411
    %v2416 = vsel %vm215, %v2412, 0.0
    %2417 = vadd.xlane.f32.xlu0 %v2416
    %v2418 = vpop.xlane.xlu0 %2417
    %v2419 = vsel %vm215, %v2413, 0.0
    %2420 = vadd.xlane.f32.xlu0 %v2419
    %v2421 = vpop.xlane.xlu0 %2420
    %v2422 = vsel %vm215, %v2414, 0.0
    %2423 = vadd.xlane.f32.xlu0 %v2422
    %v2424 = vpop.xlane.xlu0 %2423
    %v2425 = vsel %vm215, %v2415, 0.0
    %2426 = vadd.xlane.f32.xlu0 %v2425
    %v2427 = vpop.xlane.xlu0 %2426
    %v2428 = vmul.f32 %v2418, %v228
    %v2429 = vmul.f32 %v2421, %v228
    %v2430 = vmul.f32 %v2424, %v228
    %v2431 = vmul.f32 %v2427, %v228
    %v2432 = vadd.f32 %v2428, 1e-05
    %v2433 = vadd.f32 %v2429, 1e-05
    %v2434 = vadd.f32 %v2430, 1e-05
    %v2435 = vadd.f32 %v2431, 1e-05
    %v2436 = vrsqrt.pop %v2432
    %v2437 = vrsqrt.pop %v2433
    %v2438 = vrsqrt.pop %v2434
    %v2439 = vrsqrt.pop %v2435
    %v2440 = vmul.f32 %v2408, %v2436
    %v2441 = vmul.f32 %v2409, %v2437
    %v2442 = vmul.f32 %v2410, %v2438
    %v2443 = vmul.f32 %v2411, %v2439
    %v2444 = vlaneseq
    %v2445 = vshrl.u32 %v2444, 7
    %v2446 = vsub.s32 6, %v2445
    %v2447 = vrot.slane %v53, %v2446
    %v2448 = vmul.f32 %v2440, %v2447
    %v2449 = vmul.f32 %v2441, %v2447
    %v2450 = vmul.f32 %v2442, %v2447
    %v2451 = vmul.f32 %v2443, %v2447
    %2453 = vrot.lane.b32.xlu0 %v2447, 96
    %v2454 = vpop.permute.xlu0 %2453
    %v2456 = vadd.f32 %v2448, %v2454
    %v2457 = vadd.f32 %v2449, %v2454
    %v2458 = vadd.f32 %v2450, %v2454
    %v2459 = vadd.f32 %v2451, %v2454
    %s2460 = scalar_lea.vmem %s4, 128
    %v2461 = vld [vmem:[%s2460] sm:$0xff]
    %v2462 = vld [vmem:[%s2460 + $0x8] sm:$0xff]
    %v2463 = vld [vmem:[%s2460 + $0x10] sm:$0xff]
    %v2464 = vld [vmem:[%s2460 + $0x18] sm:$0xff]
    %v2465 = vlaneseq
    %v2466 = vshrl.u32 %v2465, 7
    %v2467 = vsub.s32 7, %v2466
    %v2468 = vrot.slane %v53, %v2467
    %v2470 = vsel %vm215, %v2456, 0
    %v2473 = vsel %vm215, %v2457, 0
    %v2476 = vsel %vm215, %v2458, 0
    %v2479 = vsel %vm215, %v2459, 0
    %2481 = vmatprep.subr.mxu0 0.0
    %2482 = vmatpush1.msra.mxu0 %v2461
    %2483 = vmatprep.subr.mxu0 0.0
    %2484 = vmatpush1.msra.mxu0 %v2462
    %2485 = vmatprep.subr.mxu0 0.0
    %2486 = vmatpush1.msra.mxu0 %v2463
    %2487 = vmatprep.subr.mxu0 0.0
    %2488 = vmatpush1.msra.mxu0 %v2464
    %2489 = vmatprep.subr.mxu0 0.0
    %2490 = vmatpush1.msra.mxu0 0.0
    %2491 = vmatprep.subr.mxu0 0.0
    %2492 = vmatpush1.msra.mxu0 0.0
    %2493 = vmatprep.subr.mxu0 0.0
    %2494 = vmatpush1.msra.mxu0 0.0
    %2495 = vmatprep.subr.mxu0 0.0
    %2496 = vmatpush1.msra.mxu0 0.0
    %2497 = vmatprep.subr.mxu0 0.0
    %2498 = vmatpush1.msra.mxu0 0.0
    %2499 = vmatprep.subr.mxu0 0.0
    %2500 = vmatpush1.msra.mxu0 0.0
    %2501 = vmatprep.subr.mxu0 0.0
    %2502 = vmatpush1.msra.mxu0 0.0
    %2503 = vmatprep.subr.mxu0 0.0
    %2504 = vmatpush1.msra.mxu0 0.0
    %2505 = vmatprep.subr.mxu0 0.0
    %2506 = vmatpush1.msra.mxu0 0.0
    %2507 = vmatprep.subr.mxu0 0.0
    %2508 = vmatpush1.msra.mxu0 0.0
    %2509 = vmatprep.subr.mxu0 0.0
    %2510 = vmatpush1.msra.mxu0 0.0
    %2511 = vmatprep.subr.mxu0 0.0
    %2512 = vmatpush1.msra.mxu0 0.0
    %2513 = vmatprep.subr.mxu0 0.0
    %2514 = vmatpush1.msra.mxu0 0.0
    %2515 = vmatprep.subr.mxu0 0.0
    %2516 = vmatpush1.msra.mxu0 0.0
    %2517 = vmatprep.subr.mxu0 0.0
    %2518 = vmatpush1.msra.mxu0 0.0
    %2519 = vmatprep.subr.mxu0 0.0
    %2520 = vmatpush1.msra.mxu0 0.0
    %2521 = vmatprep.subr.mxu0 0.0
    %2522 = vmatpush1.msra.mxu0 0.0
    %2523 = vmatprep.subr.mxu0 0.0
    %2524 = vmatpush1.msra.mxu0 0.0
    %2525 = vmatprep.subr.mxu0 0.0
    %2526 = vmatpush1.msra.mxu0 0.0
    %2527 = vmatprep.subr.mxu0 0.0
    %2528 = vmatpush1.msra.mxu0 0.0
    %2529 = vmatprep.subr.mxu0 0.0
    %2530 = vmatpush1.msra.mxu0 0.0
    %2531 = vmatprep.subr.mxu0 0.0
    %2532 = vmatpush1.msra.mxu0 0.0
    %2533 = vmatprep.subr.mxu0 0.0
    %2534 = vmatpush1.msra.mxu0 0.0
    %2535 = vmatprep.subr.mxu0 0.0
    %2536 = vmatpush1.msra.mxu0 0.0
    %2537 = vmatprep.subr.mxu0 0.0
    %2538 = vmatpush1.msra.mxu0 0.0
    %2539 = vmatprep.subr.mxu0 0.0
    %2540 = vmatpush1.msra.mxu0 0.0
    %2541 = vmatprep.subr.mxu0 0.0
    %2542 = vmatpush1.msra.mxu0 0.0
    %2543 = vmatprep.subr.mxu0 0.0
    %2544 = vmatpush1.msra.mxu0 0.0
    %2545 = vmatprep.mubr.f32.mxu0 0.0
    %2546 = vmatmul.mubr.f32.gmra.mrb[0].mxu0 %v2470
    %v2547 = vpop.f32.mrb[0].mxu0
    %v2548 = vadd.f32 %v2468, %v2547
    %v2549 = vpop.f32.mrb[0].mxu0
    %2550 = vmatprep.mubr.f32.mxu0 0.0
    %2551 = vmatmul.mubr.f32.gmra.mrb[0].mxu0 %v2473
    %v2552 = vpop.f32.mrb[0].mxu0
    %v2553 = vadd.f32 %v2468, %v2552
    %v2554 = vpop.f32.mrb[0].mxu0
    %2555 = vmatprep.mubr.f32.mxu0 0.0
    %2556 = vmatmul.mubr.f32.gmra.mrb[0].mxu0 %v2476
    %v2557 = vpop.f32.mrb[0].mxu0
    %v2558 = vadd.f32 %v2468, %v2557
    %v2559 = vpop.f32.mrb[0].mxu0
    %2560 = vmatprep.mubr.f32.mxu0 0.0
    %2561 = vmatmul.mubr.f32.gmra.mrb[0].mxu0 %v2479
    %v2562 = vpop.f32.mrb[0].mxu0
    %v2563 = vadd.f32 %v2468, %v2562
    %v2564 = vpop.f32.mrb[0].mxu0
    %2565 = vdwg.mxu0
    %2566 = vst [vmem:[#allocation2] sm:$0xff] %v2548
    %2567 = vst [vmem:[#allocation2 + $0x8] sm:$0xff] %v2553
    %2568 = vst [vmem:[#allocation2 + $0x10] sm:$0xff] %v2558
    %2569 = vst [vmem:[#allocation2 + $0x18] sm:$0xff] %v2563
    %2570 = vmax.xlane.f32.xlu0 %v2548
    %v2571 = vpop.xlane.xlu0 %2570
    %2572 = vmax.xlane.f32.xlu0 %v2553
    %v2573 = vpop.xlane.xlu0 %2572
    %2574 = vmax.xlane.f32.xlu0 %v2558
    %v2575 = vpop.xlane.xlu0 %2574
    %2576 = vmax.xlane.f32.xlu0 %v2563
    %v2577 = vpop.xlane.xlu0 %2576
    %v2578 = vsub.f32 %v2548, %v2571
    %v2579 = vsub.f32 %v2553, %v2573
    %v2580 = vsub.f32 %v2558, %v2575
    %v2581 = vsub.f32 %v2563, %v2577
    %v2582 = vmul.f32 %v2578, 1.442695
    %v2583 = vpow.pop %v2582
    %v2584 = vmul.f32 %v2579, 1.442695
    %v2585 = vpow.pop %v2584
    %v2586 = vmul.f32 %v2580, 1.442695
    %v2587 = vpow.pop %v2586
    %v2588 = vmul.f32 %v2581, 1.442695
    %v2589 = vpow.pop %v2588
    %2590 = vadd.xlane.f32.xlu0 %v2583
    %v2591 = vpop.xlane.xlu0 %2590
    %2592 = vadd.xlane.f32.xlu0 %v2585
    %v2593 = vpop.xlane.xlu0 %2592
    %2594 = vadd.xlane.f32.xlu0 %v2587
    %v2595 = vpop.xlane.xlu0 %2594
    %2596 = vadd.xlane.f32.xlu0 %v2589
    %v2597 = vpop.xlane.xlu0 %2596
    %v2598 = vlog2.pop %v2591
    %v2599 = vmul.f32 %v2598, 0.6931472
    %v2600 = vlog2.pop %v2593
    %v2601 = vmul.f32 %v2600, 0.6931472
    %v2602 = vlog2.pop %v2595
    %v2603 = vmul.f32 %v2602, 0.6931472
    %v2604 = vlog2.pop %v2597
    %v2605 = vmul.f32 %v2604, 0.6931472
    %v2606 = vadd.f32 %v2599, %v2571
    %v2607 = vadd.f32 %v2601, %v2573
    %v2608 = vadd.f32 %v2603, %v2575
    %v2609 = vadd.f32 %v2605, %v2577
    %v2610 = vld [vmem:[%s1] sm:$0xff]
    %v2611 = vld [vmem:[%s1 + $0x8] sm:$0xff]
    %v2612 = vld [vmem:[%s1 + $0x10] sm:$0xff]
    %v2613 = vld [vmem:[%s1 + $0x18] sm:$0xff]
    %2614 = vset.pattern.permute.xlu0 0
    %2615 = vperm.xlu0 %2614, %v2610
    %v2616 = vpop.permute.xlu0 %2615
    %2617 = vset.pattern.permute.xlu0 0
    %2618 = vperm.xlu0 %2617, %v2611
    %v2619 = vpop.permute.xlu0 %2618
    %2620 = vset.pattern.permute.xlu0 0
    %2621 = vperm.xlu0 %2620, %v2612
    %v2622 = vpop.permute.xlu0 %2621
    %2623 = vset.pattern.permute.xlu0 0
    %2624 = vperm.xlu0 %2623, %v2613
    %v2625 = vpop.permute.xlu0 %2624
    %vm2626 = vcmp.eq.s32.totalorder %v55, %v2616
    %vm2627 = vcmp.eq.s32.totalorder %v55, %v2619
    %vm2628 = vcmp.eq.s32.totalorder %v55, %v2622
    %vm2629 = vcmp.eq.s32.totalorder %v55, %v2625
    %v2630 = vsel %vm2626, %v2548, 0.0
    %v2631 = vsel %vm2627, %v2553, 0.0
    %v2632 = vsel %vm2628, %v2558, 0.0
    %v2633 = vsel %vm2629, %v2563, 0.0
    %2634 = vadd.xlane.f32.xlu0 %v2630
    %v2635 = vpop.xlane.xlu0 %2634
    %2636 = vadd.xlane.f32.xlu0 %v2631
    %v2637 = vpop.xlane.xlu0 %2636
    %2638 = vadd.xlane.f32.xlu0 %v2632
    %v2639 = vpop.xlane.xlu0 %2638
    %2640 = vadd.xlane.f32.xlu0 %v2633
    %v2641 = vpop.xlane.xlu0 %2640
    %v2642 = vsub.f32 %v2606, %v2635
    %v2643 = vsub.f32 %v2607, %v2637
    %v2644 = vsub.f32 %v2608, %v2639
    %v2645 = vsub.f32 %v2609, %v2641
    %vm2646 = vcmask 7168
    %2647 = vst.msk [vmem:[%s8] sm:$0xff] %vm2646, %v2642
    %2648 = vst.msk [vmem:[%s8 + $0x8] sm:$0xff] %vm2646, %v2643
    %2649 = vst.msk [vmem:[%s8 + $0x10] sm:$0xff] %vm2646, %v2644
    %2650 = vst.msk [vmem:[%s8 + $0x18] sm:$0xff] %vm2646, %v2645
    // Predicated region
    $region30: #{model_forward.1} parent=1 // pred_check
      _
    $region31: #{model_forward.1} parent=1 // pred_check_branch
      %2652 = sbr.rel (0) target = $region33
    $region32: #{model_forward.1} parent=1 // pred_region
      %s2654 = ssub.s32 512, 512
      %2655 = vsyncadd [#allocation3], %s2654
      %s2656 = sshll.u32 [#allocation2], 4
      %s2657 = int_to_ptr.vmem [resolvable:$true] %s2656
      %2662 = dma.vmem_to_hbm [thread:$0]  %s2657, 512, %s7, [#allocation3], 128, 128, 8
    $region33: #{model_forward.1} parent=1 // pred_fallthru
      _
    // Predicated region
    $region34: #{model_forward.1} parent=1 // pred_check
      _
    $region35: #{model_forward.1} parent=1 // pred_check_branch
      %2664 = sbr.rel (0) target = $region37
    $region36: #{model_forward.1} parent=1 // pred_region
      _
    $region37: #{model_forward.1} parent=1 // pred_fallthru
      _
    // Predicated region
    $region38: #{model_forward.1} parent=1 // pred_check
      _
    $region39: #{model_forward.1} parent=1 // pred_check_branch
      %2666 = sbr.rel (0) target = $region41
    $region40: #{model_forward.1} parent=1 // pred_region
      %2667 = dma.done [#allocation3], 512
    $region41: #{model_forward.1} parent=1 // pred_fallthru
      _
    // Predicated region
    $region42: #{model_forward.1} parent=1 // pred_check
      _
    $region43: #{model_forward.1} parent=1 // pred_check_branch
      %2669 = sbr.rel (0) target = $region45
    $region44: #{model_forward.1} parent=1 // pred_region
      _
    $region45: #{model_forward.1} parent=1 // pred_fallthru
      _
    %2670 = vsyncpa [#allocation3], 1

</llo_original>
